<compile_context>
chip_gen: v7x
topology: tpu7x:2x2x1
jax: 0.10.0
libtpu: 0.0.40
codegen_flags: <defaults>
</compile_context>

<pallas_src>
import functools

import jax
import jax.numpy as jnp
from jax import lax
from jax.experimental import pallas as pl
from jax.experimental.pallas import tpu as pltpu


def _conv_relu_kernel(x_ref, w_ref, b_ref, o_ref, pad_ref, *, num_layers):
    """Fused stack of [3x3 conv (pad=1, stride=1) + ReLU] layers, NCHW, small-C VPU path.

    x_ref:   (NB, C, H, W)   VMEM  unpadded input images for this grid step
    w_ref:   (L*C*C*9,)      SMEM  conv weights, layer-major OIHW, flattened
    b_ref:   (L*C,)          SMEM  biases
    o_ref:   (NB, C, H, W)   VMEM  output of the last fused layer
    pad_ref: (C, H+2, W+2)   VMEM  zero-halo activation plane (reused per image/layer)
    """
    NB, C, H, W = o_ref.shape
    L = num_layers

    # Zero the halo scratch once per grid step.  Only the 1-wide border must stay
    # zero; the interior is overwritten for every image / layer.  ~5 KB -> cheap,
    # and safe under megacore partitioning (each core re-zeroes its own scratch).
    pad_ref[...] = jnp.zeros_like(pad_ref)

    # Hoist bias broadcasts out of the image loop (broadcast_in_dim is not CSE'd).
    bias_planes = [
        [jnp.full((H, W), b_ref[l * C + co], dtype=jnp.float32) for co in range(C)]
        for l in range(L)
    ]

    def image_body(n):
        # In-kernel halo pad: store the image into the scratch interior.
        for ci in range(C):
            pad_ref[ci, 1:H + 1, 1:W + 1] = x_ref[n, ci, :, :].astype(jnp.float32)

        for l in range(L):
            # One live f32 accumulator per output channel (C x 2 vregs),
            # initialised with the broadcast bias -> no separate bias pass.
            accs = [bias_planes[l][co] for co in range(C)]

            # (ci, kh, kw) outer, co inner: each shifted (H, W) window is loaded
            # (and relayout'ed) exactly once and reused across all C_out
            # accumulators.  Weights are single SMEM scalar loads per tap.
            for ci in range(C):
                for kh in range(3):
                    for kw in range(3):
                        window = pad_ref[ci, kh:kh + H, kw:kw + W]
                        tap = kh * 3 + kw
                        for co in range(C):
                            w_scal = w_ref[((l * C + co) * C + ci) * 9 + tap]
                            accs[co] = accs[co] + w_scal * window

            accs = [jnp.maximum(a, 0.0) for a in accs]

            if l + 1 < L:
                # Fused layer boundary: activation stays in VMEM (no HBM trip);
                # it becomes the next layer's padded input.
                for c in range(C):
                    pad_ref[c, 1:H + 1, 1:W + 1] = accs[c]
            else:
                for co in range(C):
                    o_ref[n, co, :, :] = accs[co].astype(o_ref.dtype)

    if NB <= 8:
        # Small blocks: static unroll (LLO scheduler sees everything).
        for n in range(NB):
            image_body(n)
    else:
        # Large blocks: real loop bounds live ranges / code size.
        def _body(n, carry):
            image_body(n)
            return carry

        lax.fori_loop(0, NB, _body, 0)


def conv_relu_block(x_nchw, weight, bias, *, images_per_block=None):
    """Pallas implementation of Conv_Relu_Block.forward (optionally a fused stack).

    x_nchw: (N, C, H, W) float32
    weight: (C, C, 3, 3) float32 (PyTorch OIHW), or (L, C, C, 3, 3) to fuse a
            stack of L Conv_Relu_Blocks into one pallas_call.
    bias:   (C,) float32, or (L, C) for the fused stack.
    returns: (N, C, H, W) float32 (output of the last layer)

    images_per_block: images handled per grid step.  Default gives at most 2 grid
    steps (one per TensorCore on v7x); pass images_per_block=N on 1-TC chips
    (v5e/v6e) to collapse to a single step.
    """
    N, C, H, W = x_nchw.shape
    if weight.ndim == 4:
        weight = weight[None]
        bias = bias[None]
    L = weight.shape[0]
    assert weight.shape == (L, C, C, 3, 3)
    assert bias.shape == (L, C)

    if images_per_block is None:
        grid_steps = 2 if (N % 2 == 0 and N >= 2) else 1
        images_per_block = N // grid_steps
    NB = images_per_block
    assert N % NB == 0, "images_per_block must divide the batch"

    # Scalar parameters -> SMEM (flattened, layer-major OIHW: trivial int index math).
    w_flat = weight.reshape(L * C * C * 9).astype(jnp.float32)
    b_flat = bias.reshape(L * C).astype(jnp.float32)

    kernel = functools.partial(_conv_relu_kernel, num_layers=L)

    return pl.pallas_call(
        kernel,
        out_shape=jax.ShapeDtypeStruct((N, C, H, W), x_nchw.dtype),
        grid_spec=pltpu.PrefetchScalarGridSpec(
            num_scalar_prefetch=0,
            grid=(N // NB,),
            in_specs=[
                # Unpadded input block: full C/H/W extents -> one contiguous
                # HBM->VMEM DMA per image (no 18-element strided rows).
                pl.BlockSpec((NB, C, H, W), lambda n: (n, 0, 0, 0)),
                pl.BlockSpec(memory_space=pltpu.MemorySpace.SMEM),   # weights
                pl.BlockSpec(memory_space=pltpu.MemorySpace.SMEM),   # bias
            ],
            out_specs=pl.BlockSpec((NB, C, H, W), lambda n: (n, 0, 0, 0)),
            scratch_shapes=[pltpu.VMEM((C, H + 2, W + 2), jnp.float32)],
        ),
        compiler_params=pltpu.CompilerParams(
            dimension_semantics=("parallel",),
        ),
    )(x_nchw, w_flat, b_flat)


def _reference(x_nchw, weight_oihw, bias):
    # Plain-JAX reference (same semantics as nn.Conv2d(padding=1) + ReLU).
    y = jax.lax.conv_general_dilated(
        x_nchw, weight_oihw,
        window_strides=(1, 1),
        padding=((1, 1), (1, 1)),
        dimension_numbers=("NCHW", "OIHW", "NCHW"),
    )
    y = y + bias.reshape(1, -1, 1, 1)
    return jnp.maximum(y, 0.0)


if __name__ == "__main__":
    key = jax.random.PRNGKey(0)
    k_x, k_w, k_b = jax.random.split(key, 3)

    N, C, H, W = 2, 4, 16, 16  # fn = 4

    x = jax.random.normal(k_x, (N, C, H, W), dtype=jnp.float32)
    # Deterministic synthetic parameters (Conv2d(fn, fn, 3) shapes).
    weight = jax.random.normal(k_w, (C, C, 3, 3), dtype=jnp.float32) * 0.1
    bias = jax.random.normal(k_b, (C,), dtype=jnp.float32) * 0.1

    run = jax.jit(conv_relu_block)
    out = jax.block_until_ready(run(x, weight, bias))

    ref = _reference(x, weight, bias)
    assert out.shape == (N, C, H, W)
    assert jnp.allclose(out, ref, atol=1e-4, rtol=1e-4)

    print("KERNEL_OK")
</pallas_src>

<mosaic_0001>
module attributes {stable_mosaic.version = 11 : i64} {
  func.func @_conv_relu_kernel(%arg0: i32, %arg1: memref<1x4x16x16xf32, #tpu.memory_space<vmem>>, %arg2: memref<144xf32, #tpu.memory_space<smem>>, %arg3: memref<4xf32, #tpu.memory_space<smem>>, %arg4: memref<1x4x16x16xf32, #tpu.memory_space<vmem>>, %arg5: memref<4x18x18xf32, #tpu.memory_space<vmem>>) attributes {dimension_semantics = [#tpu.dimension_semantics<parallel>], iteration_bounds = array<i64: 2>, scalar_prefetch = 0 : i64, scratch_operands = 1 : i64, tpu.core_type = #tpu.core_type<tc>, window_params = [{transform_indices = @transform_0, window_bounds = array<i64: 1, 4, 16, 16>}, {transform_indices = @transform_1, window_bounds = array<i64: 144>}, {transform_indices = @transform_2, window_bounds = array<i64: 4>}, {transform_indices = @transform_3, window_bounds = array<i64: 1, 4, 16, 16>}]} {
    %cst = arith.constant 0.000000e+00 : f32
    %0 = vector.broadcast %cst : f32 to vector<4x18x18xf32>
    %c0 = arith.constant 0 : index
    %c0_0 = arith.constant 0 : index
    %c0_1 = arith.constant 0 : index
    %1 = vector.load %arg5[%c0, %c0_0, %c0_1] : memref<4x18x18xf32, #tpu.memory_space<vmem>>, vector<4x18x18xf32>
    tpu.vector_store %arg5[%c0, %c0_0, %c0_1], %0 {strides = array<i32>} : memref<4x18x18xf32, #tpu.memory_space<vmem>>, vector<4x18x18xf32>,
    %c0_2 = arith.constant 0 : index
    %2 = memref.load %arg3[%c0_2] : memref<4xf32, #tpu.memory_space<smem>>
    %3 = vector.broadcast %2 : f32 to vector<16x16xf32>
    %c1 = arith.constant 1 : index
    %4 = memref.load %arg3[%c1] : memref<4xf32, #tpu.memory_space<smem>>
    %5 = vector.broadcast %4 : f32 to vector<16x16xf32>
    %c2 = arith.constant 2 : index
    %6 = memref.load %arg3[%c2] : memref<4xf32, #tpu.memory_space<smem>>
    %7 = vector.broadcast %6 : f32 to vector<16x16xf32>
    %c3 = arith.constant 3 : index
    %8 = memref.load %arg3[%c3] : memref<4xf32, #tpu.memory_space<smem>>
    %9 = vector.broadcast %8 : f32 to vector<16x16xf32>
    %c0_3 = arith.constant 0 : index
    %c0_4 = arith.constant 0 : index
    %c0_5 = arith.constant 0 : index
    %c0_6 = arith.constant 0 : index
    %10 = vector.load %arg1[%c0_3, %c0_4, %c0_5, %c0_6] : memref<1x4x16x16xf32, #tpu.memory_space<vmem>>, vector<1x1x16x16xf32>
    %11 = vector.shape_cast %10 : vector<1x1x16x16xf32> to vector<16x16xf32>
    %c0_7 = arith.constant 0 : index
    %c1_8 = arith.constant 1 : index
    %c1_9 = arith.constant 1 : index
    %12 = vector.load %arg5[%c0_7, %c1_8, %c1_9] : memref<4x18x18xf32, #tpu.memory_space<vmem>>, vector<1x16x16xf32>
    %13 = vector.shape_cast %12 : vector<1x16x16xf32> to vector<16x16xf32>
    %14 = vector.shape_cast %11 : vector<16x16xf32> to vector<1x16x16xf32>
    tpu.vector_store %arg5[%c0_7, %c1_8, %c1_9], %14 {strides = array<i32>} : memref<4x18x18xf32, #tpu.memory_space<vmem>>, vector<1x16x16xf32>,
    %c0_10 = arith.constant 0 : index
    %c1_11 = arith.constant 1 : index
    %c0_12 = arith.constant 0 : index
    %c0_13 = arith.constant 0 : index
    %15 = vector.load %arg1[%c0_10, %c1_11, %c0_12, %c0_13] : memref<1x4x16x16xf32, #tpu.memory_space<vmem>>, vector<1x1x16x16xf32>
    %16 = vector.shape_cast %15 : vector<1x1x16x16xf32> to vector<16x16xf32>
    %c1_14 = arith.constant 1 : index
    %c1_15 = arith.constant 1 : index
    %c1_16 = arith.constant 1 : index
    %17 = vector.load %arg5[%c1_14, %c1_15, %c1_16] : memref<4x18x18xf32, #tpu.memory_space<vmem>>, vector<1x16x16xf32>
    %18 = vector.shape_cast %17 : vector<1x16x16xf32> to vector<16x16xf32>
    %19 = vector.shape_cast %16 : vector<16x16xf32> to vector<1x16x16xf32>
    tpu.vector_store %arg5[%c1_14, %c1_15, %c1_16], %19 {strides = array<i32>} : memref<4x18x18xf32, #tpu.memory_space<vmem>>, vector<1x16x16xf32>,
    %c0_17 = arith.constant 0 : index
    %c2_18 = arith.constant 2 : index
    %c0_19 = arith.constant 0 : index
    %c0_20 = arith.constant 0 : index
    %20 = vector.load %arg1[%c0_17, %c2_18, %c0_19, %c0_20] : memref<1x4x16x16xf32, #tpu.memory_space<vmem>>, vector<1x1x16x16xf32>
    %21 = vector.shape_cast %20 : vector<1x1x16x16xf32> to vector<16x16xf32>
    %c2_21 = arith.constant 2 : index
    %c1_22 = arith.constant 1 : index
    %c1_23 = arith.constant 1 : index
    %22 = vector.load %arg5[%c2_21, %c1_22, %c1_23] : memref<4x18x18xf32, #tpu.memory_space<vmem>>, vector<1x16x16xf32>
    %23 = vector.shape_cast %22 : vector<1x16x16xf32> to vector<16x16xf32>
    %24 = vector.shape_cast %21 : vector<16x16xf32> to vector<1x16x16xf32>
    tpu.vector_store %arg5[%c2_21, %c1_22, %c1_23], %24 {strides = array<i32>} : memref<4x18x18xf32, #tpu.memory_space<vmem>>, vector<1x16x16xf32>,
    %c0_24 = arith.constant 0 : index
    %c3_25 = arith.constant 3 : index
    %c0_26 = arith.constant 0 : index
    %c0_27 = arith.constant 0 : index
    %25 = vector.load %arg1[%c0_24, %c3_25, %c0_26, %c0_27] : memref<1x4x16x16xf32, #tpu.memory_space<vmem>>, vector<1x1x16x16xf32>
    %26 = vector.shape_cast %25 : vector<1x1x16x16xf32> to vector<16x16xf32>
    %c3_28 = arith.constant 3 : index
    %c1_29 = arith.constant 1 : index
    %c1_30 = arith.constant 1 : index
    %27 = vector.load %arg5[%c3_28, %c1_29, %c1_30] : memref<4x18x18xf32, #tpu.memory_space<vmem>>, vector<1x16x16xf32>
    %28 = vector.shape_cast %27 : vector<1x16x16xf32> to vector<16x16xf32>
    %29 = vector.shape_cast %26 : vector<16x16xf32> to vector<1x16x16xf32>
    tpu.vector_store %arg5[%c3_28, %c1_29, %c1_30], %29 {strides = array<i32>} : memref<4x18x18xf32, #tpu.memory_space<vmem>>, vector<1x16x16xf32>,
    %c0_31 = arith.constant 0 : index
    %c0_32 = arith.constant 0 : index
    %c0_33 = arith.constant 0 : index
    %30 = vector.load %arg5[%c0_31, %c0_32, %c0_33] : memref<4x18x18xf32, #tpu.memory_space<vmem>>, vector<1x16x16xf32>
    %31 = vector.shape_cast %30 : vector<1x16x16xf32> to vector<16x16xf32>
    %c0_34 = arith.constant 0 : index
    %32 = memref.load %arg2[%c0_34] : memref<144xf32, #tpu.memory_space<smem>>
    %33 = vector.broadcast %32 : f32 to vector<16x16xf32>
    %34 = arith.mulf %33, %31 : vector<16x16xf32>
    %35 = arith.addf %3, %34 : vector<16x16xf32>
    %c36 = arith.constant 36 : index
    %36 = memref.load %arg2[%c36] : memref<144xf32, #tpu.memory_space<smem>>
    %37 = vector.broadcast %36 : f32 to vector<16x16xf32>
    %38 = arith.mulf %37, %31 : vector<16x16xf32>
    %39 = arith.addf %5, %38 : vector<16x16xf32>
    %c72 = arith.constant 72 : index
    %40 = memref.load %arg2[%c72] : memref<144xf32, #tpu.memory_space<smem>>
    %41 = vector.broadcast %40 : f32 to vector<16x16xf32>
    %42 = arith.mulf %41, %31 : vector<16x16xf32>
    %43 = arith.addf %7, %42 : vector<16x16xf32>
    %c108 = arith.constant 108 : index
    %44 = memref.load %arg2[%c108] : memref<144xf32, #tpu.memory_space<smem>>
    %45 = vector.broadcast %44 : f32 to vector<16x16xf32>
    %46 = arith.mulf %45, %31 : vector<16x16xf32>
    %47 = arith.addf %9, %46 : vector<16x16xf32>
    %c0_35 = arith.constant 0 : index
    %c0_36 = arith.constant 0 : index
    %c1_37 = arith.constant 1 : index
    %48 = vector.load %arg5[%c0_35, %c0_36, %c1_37] : memref<4x18x18xf32, #tpu.memory_space<vmem>>, vector<1x16x16xf32>
    %49 = vector.shape_cast %48 : vector<1x16x16xf32> to vector<16x16xf32>
    %c1_38 = arith.constant 1 : index
    %50 = memref.load %arg2[%c1_38] : memref<144xf32, #tpu.memory_space<smem>>
    %51 = vector.broadcast %50 : f32 to vector<16x16xf32>
    %52 = arith.mulf %51, %49 : vector<16x16xf32>
    %53 = arith.addf %35, %52 : vector<16x16xf32>
    %c37 = arith.constant 37 : index
    %54 = memref.load %arg2[%c37] : memref<144xf32, #tpu.memory_space<smem>>
    %55 = vector.broadcast %54 : f32 to vector<16x16xf32>
    %56 = arith.mulf %55, %49 : vector<16x16xf32>
    %57 = arith.addf %39, %56 : vector<16x16xf32>
    %c73 = arith.constant 73 : index
    %58 = memref.load %arg2[%c73] : memref<144xf32, #tpu.memory_space<smem>>
    %59 = vector.broadcast %58 : f32 to vector<16x16xf32>
    %60 = arith.mulf %59, %49 : vector<16x16xf32>
    %61 = arith.addf %43, %60 : vector<16x16xf32>
    %c109 = arith.constant 109 : index
    %62 = memref.load %arg2[%c109] : memref<144xf32, #tpu.memory_space<smem>>
    %63 = vector.broadcast %62 : f32 to vector<16x16xf32>
    %64 = arith.mulf %63, %49 : vector<16x16xf32>
    %65 = arith.addf %47, %64 : vector<16x16xf32>
    %c0_39 = arith.constant 0 : index
    %c0_40 = arith.constant 0 : index
    %c2_41 = arith.constant 2 : index
    %66 = vector.load %arg5[%c0_39, %c0_40, %c2_41] : memref<4x18x18xf32, #tpu.memory_space<vmem>>, vector<1x16x16xf32>
    %67 = vector.shape_cast %66 : vector<1x16x16xf32> to vector<16x16xf32>
    %c2_42 = arith.constant 2 : index
    %68 = memref.load %arg2[%c2_42] : memref<144xf32, #tpu.memory_space<smem>>
    %69 = vector.broadcast %68 : f32 to vector<16x16xf32>
    %70 = arith.mulf %69, %67 : vector<16x16xf32>
    %71 = arith.addf %53, %70 : vector<16x16xf32>
    %c38 = arith.constant 38 : index
    %72 = memref.load %arg2[%c38] : memref<144xf32, #tpu.memory_space<smem>>
    %73 = vector.broadcast %72 : f32 to vector<16x16xf32>
    %74 = arith.mulf %73, %67 : vector<16x16xf32>
    %75 = arith.addf %57, %74 : vector<16x16xf32>
    %c74 = arith.constant 74 : index
    %76 = memref.load %arg2[%c74] : memref<144xf32, #tpu.memory_space<smem>>
    %77 = vector.broadcast %76 : f32 to vector<16x16xf32>
    %78 = arith.mulf %77, %67 : vector<16x16xf32>
    %79 = arith.addf %61, %78 : vector<16x16xf32>
    %c110 = arith.constant 110 : index
    %80 = memref.load %arg2[%c110] : memref<144xf32, #tpu.memory_space<smem>>
    %81 = vector.broadcast %80 : f32 to vector<16x16xf32>
    %82 = arith.mulf %81, %67 : vector<16x16xf32>
    %83 = arith.addf %65, %82 : vector<16x16xf32>
    %c0_43 = arith.constant 0 : index
    %c1_44 = arith.constant 1 : index
    %c0_45 = arith.constant 0 : index
    %84 = vector.load %arg5[%c0_43, %c1_44, %c0_45] : memref<4x18x18xf32, #tpu.memory_space<vmem>>, vector<1x16x16xf32>
    %85 = vector.shape_cast %84 : vector<1x16x16xf32> to vector<16x16xf32>
    %c3_46 = arith.constant 3 : index
    %86 = memref.load %arg2[%c3_46] : memref<144xf32, #tpu.memory_space<smem>>
    %87 = vector.broadcast %86 : f32 to vector<16x16xf32>
    %88 = arith.mulf %87, %85 : vector<16x16xf32>
    %89 = arith.addf %71, %88 : vector<16x16xf32>
    %c39 = arith.constant 39 : index
    %90 = memref.load %arg2[%c39] : memref<144xf32, #tpu.memory_space<smem>>
    %91 = vector.broadcast %90 : f32 to vector<16x16xf32>
    %92 = arith.mulf %91, %85 : vector<16x16xf32>
    %93 = arith.addf %75, %92 : vector<16x16xf32>
    %c75 = arith.constant 75 : index
    %94 = memref.load %arg2[%c75] : memref<144xf32, #tpu.memory_space<smem>>
    %95 = vector.broadcast %94 : f32 to vector<16x16xf32>
    %96 = arith.mulf %95, %85 : vector<16x16xf32>
    %97 = arith.addf %79, %96 : vector<16x16xf32>
    %c111 = arith.constant 111 : index
    %98 = memref.load %arg2[%c111] : memref<144xf32, #tpu.memory_space<smem>>
    %99 = vector.broadcast %98 : f32 to vector<16x16xf32>
    %100 = arith.mulf %99, %85 : vector<16x16xf32>
    %101 = arith.addf %83, %100 : vector<16x16xf32>
    %c0_47 = arith.constant 0 : index
    %c1_48 = arith.constant 1 : index
    %c1_49 = arith.constant 1 : index
    %102 = vector.load %arg5[%c0_47, %c1_48, %c1_49] : memref<4x18x18xf32, #tpu.memory_space<vmem>>, vector<1x16x16xf32>
    %103 = vector.shape_cast %102 : vector<1x16x16xf32> to vector<16x16xf32>
    %c4 = arith.constant 4 : index
    %104 = memref.load %arg2[%c4] : memref<144xf32, #tpu.memory_space<smem>>
    %105 = vector.broadcast %104 : f32 to vector<16x16xf32>
    %106 = arith.mulf %105, %103 : vector<16x16xf32>
    %107 = arith.addf %89, %106 : vector<16x16xf32>
    %c40 = arith.constant 40 : index
    %108 = memref.load %arg2[%c40] : memref<144xf32, #tpu.memory_space<smem>>
    %109 = vector.broadcast %108 : f32 to vector<16x16xf32>
    %110 = arith.mulf %109, %103 : vector<16x16xf32>
    %111 = arith.addf %93, %110 : vector<16x16xf32>
    %c76 = arith.constant 76 : index
    %112 = memref.load %arg2[%c76] : memref<144xf32, #tpu.memory_space<smem>>
    %113 = vector.broadcast %112 : f32 to vector<16x16xf32>
    %114 = arith.mulf %113, %103 : vector<16x16xf32>
    %115 = arith.addf %97, %114 : vector<16x16xf32>
    %c112 = arith.constant 112 : index
    %116 = memref.load %arg2[%c112] : memref<144xf32, #tpu.memory_space<smem>>
    %117 = vector.broadcast %116 : f32 to vector<16x16xf32>
    %118 = arith.mulf %117, %103 : vector<16x16xf32>
    %119 = arith.addf %101, %118 : vector<16x16xf32>
    %c0_50 = arith.constant 0 : index
    %c1_51 = arith.constant 1 : index
    %c2_52 = arith.constant 2 : index
    %120 = vector.load %arg5[%c0_50, %c1_51, %c2_52] : memref<4x18x18xf32, #tpu.memory_space<vmem>>, vector<1x16x16xf32>
    %121 = vector.shape_cast %120 : vector<1x16x16xf32> to vector<16x16xf32>
    %c5 = arith.constant 5 : index
    %122 = memref.load %arg2[%c5] : memref<144xf32, #tpu.memory_space<smem>>
    %123 = vector.broadcast %122 : f32 to vector<16x16xf32>
    %124 = arith.mulf %123, %121 : vector<16x16xf32>
    %125 = arith.addf %107, %124 : vector<16x16xf32>
    %c41 = arith.constant 41 : index
    %126 = memref.load %arg2[%c41] : memref<144xf32, #tpu.memory_space<smem>>
    %127 = vector.broadcast %126 : f32 to vector<16x16xf32>
    %128 = arith.mulf %127, %121 : vector<16x16xf32>
    %129 = arith.addf %111, %128 : vector<16x16xf32>
    %c77 = arith.constant 77 : index
    %130 = memref.load %arg2[%c77] : memref<144xf32, #tpu.memory_space<smem>>
    %131 = vector.broadcast %130 : f32 to vector<16x16xf32>
    %132 = arith.mulf %131, %121 : vector<16x16xf32>
    %133 = arith.addf %115, %132 : vector<16x16xf32>
    %c113 = arith.constant 113 : index
    %134 = memref.load %arg2[%c113] : memref<144xf32, #tpu.memory_space<smem>>
    %135 = vector.broadcast %134 : f32 to vector<16x16xf32>
    %136 = arith.mulf %135, %121 : vector<16x16xf32>
    %137 = arith.addf %119, %136 : vector<16x16xf32>
    %c0_53 = arith.constant 0 : index
    %c2_54 = arith.constant 2 : index
    %c0_55 = arith.constant 0 : index
    %138 = vector.load %arg5[%c0_53, %c2_54, %c0_55] : memref<4x18x18xf32, #tpu.memory_space<vmem>>, vector<1x16x16xf32>
    %139 = vector.shape_cast %138 : vector<1x16x16xf32> to vector<16x16xf32>
    %c6 = arith.constant 6 : index
    %140 = memref.load %arg2[%c6] : memref<144xf32, #tpu.memory_space<smem>>
    %141 = vector.broadcast %140 : f32 to vector<16x16xf32>
    %142 = arith.mulf %141, %139 : vector<16x16xf32>
    %143 = arith.addf %125, %142 : vector<16x16xf32>
    %c42 = arith.constant 42 : index
    %144 = memref.load %arg2[%c42] : memref<144xf32, #tpu.memory_space<smem>>
    %145 = vector.broadcast %144 : f32 to vector<16x16xf32>
    %146 = arith.mulf %145, %139 : vector<16x16xf32>
    %147 = arith.addf %129, %146 : vector<16x16xf32>
    %c78 = arith.constant 78 : index
    %148 = memref.load %arg2[%c78] : memref<144xf32, #tpu.memory_space<smem>>
    %149 = vector.broadcast %148 : f32 to vector<16x16xf32>
    %150 = arith.mulf %149, %139 : vector<16x16xf32>
    %151 = arith.addf %133, %150 : vector<16x16xf32>
    %c114 = arith.constant 114 : index
    %152 = memref.load %arg2[%c114] : memref<144xf32, #tpu.memory_space<smem>>
    %153 = vector.broadcast %152 : f32 to vector<16x16xf32>
    %154 = arith.mulf %153, %139 : vector<16x16xf32>
    %155 = arith.addf %137, %154 : vector<16x16xf32>
    %c0_56 = arith.constant 0 : index
    %c2_57 = arith.constant 2 : index
    %c1_58 = arith.constant 1 : index
    %156 = vector.load %arg5[%c0_56, %c2_57, %c1_58] : memref<4x18x18xf32, #tpu.memory_space<vmem>>, vector<1x16x16xf32>
    %157 = vector.shape_cast %156 : vector<1x16x16xf32> to vector<16x16xf32>
    %c7 = arith.constant 7 : index
    %158 = memref.load %arg2[%c7] : memref<144xf32, #tpu.memory_space<smem>>
    %159 = vector.broadcast %158 : f32 to vector<16x16xf32>
    %160 = arith.mulf %159, %157 : vector<16x16xf32>
    %161 = arith.addf %143, %160 : vector<16x16xf32>
    %c43 = arith.constant 43 : index
    %162 = memref.load %arg2[%c43] : memref<144xf32, #tpu.memory_space<smem>>
    %163 = vector.broadcast %162 : f32 to vector<16x16xf32>
    %164 = arith.mulf %163, %157 : vector<16x16xf32>
    %165 = arith.addf %147, %164 : vector<16x16xf32>
    %c79 = arith.constant 79 : index
    %166 = memref.load %arg2[%c79] : memref<144xf32, #tpu.memory_space<smem>>
    %167 = vector.broadcast %166 : f32 to vector<16x16xf32>
    %168 = arith.mulf %167, %157 : vector<16x16xf32>
    %169 = arith.addf %151, %168 : vector<16x16xf32>
    %c115 = arith.constant 115 : index
    %170 = memref.load %arg2[%c115] : memref<144xf32, #tpu.memory_space<smem>>
    %171 = vector.broadcast %170 : f32 to vector<16x16xf32>
    %172 = arith.mulf %171, %157 : vector<16x16xf32>
    %173 = arith.addf %155, %172 : vector<16x16xf32>
    %c0_59 = arith.constant 0 : index
    %c2_60 = arith.constant 2 : index
    %c2_61 = arith.constant 2 : index
    %174 = vector.load %arg5[%c0_59, %c2_60, %c2_61] : memref<4x18x18xf32, #tpu.memory_space<vmem>>, vector<1x16x16xf32>
    %175 = vector.shape_cast %174 : vector<1x16x16xf32> to vector<16x16xf32>
    %c8 = arith.constant 8 : index
    %176 = memref.load %arg2[%c8] : memref<144xf32, #tpu.memory_space<smem>>
    %177 = vector.broadcast %176 : f32 to vector<16x16xf32>
    %178 = arith.mulf %177, %175 : vector<16x16xf32>
    %179 = arith.addf %161, %178 : vector<16x16xf32>
    %c44 = arith.constant 44 : index
    %180 = memref.load %arg2[%c44] : memref<144xf32, #tpu.memory_space<smem>>
    %181 = vector.broadcast %180 : f32 to vector<16x16xf32>
    %182 = arith.mulf %181, %175 : vector<16x16xf32>
    %183 = arith.addf %165, %182 : vector<16x16xf32>
    %c80 = arith.constant 80 : index
    %184 = memref.load %arg2[%c80] : memref<144xf32, #tpu.memory_space<smem>>
    %185 = vector.broadcast %184 : f32 to vector<16x16xf32>
    %186 = arith.mulf %185, %175 : vector<16x16xf32>
    %187 = arith.addf %169, %186 : vector<16x16xf32>
    %c116 = arith.constant 116 : index
    %188 = memref.load %arg2[%c116] : memref<144xf32, #tpu.memory_space<smem>>
    %189 = vector.broadcast %188 : f32 to vector<16x16xf32>
    %190 = arith.mulf %189, %175 : vector<16x16xf32>
    %191 = arith.addf %173, %190 : vector<16x16xf32>
    %c1_62 = arith.constant 1 : index
    %c0_63 = arith.constant 0 : index
    %c0_64 = arith.constant 0 : index
    %192 = vector.load %arg5[%c1_62, %c0_63, %c0_64] : memref<4x18x18xf32, #tpu.memory_space<vmem>>, vector<1x16x16xf32>
    %193 = vector.shape_cast %192 : vector<1x16x16xf32> to vector<16x16xf32>
    %c9 = arith.constant 9 : index
    %194 = memref.load %arg2[%c9] : memref<144xf32, #tpu.memory_space<smem>>
    %195 = vector.broadcast %194 : f32 to vector<16x16xf32>
    %196 = arith.mulf %195, %193 : vector<16x16xf32>
    %197 = arith.addf %179, %196 : vector<16x16xf32>
    %c45 = arith.constant 45 : index
    %198 = memref.load %arg2[%c45] : memref<144xf32, #tpu.memory_space<smem>>
    %199 = vector.broadcast %198 : f32 to vector<16x16xf32>
    %200 = arith.mulf %199, %193 : vector<16x16xf32>
    %201 = arith.addf %183, %200 : vector<16x16xf32>
    %c81 = arith.constant 81 : index
    %202 = memref.load %arg2[%c81] : memref<144xf32, #tpu.memory_space<smem>>
    %203 = vector.broadcast %202 : f32 to vector<16x16xf32>
    %204 = arith.mulf %203, %193 : vector<16x16xf32>
    %205 = arith.addf %187, %204 : vector<16x16xf32>
    %c117 = arith.constant 117 : index
    %206 = memref.load %arg2[%c117] : memref<144xf32, #tpu.memory_space<smem>>
    %207 = vector.broadcast %206 : f32 to vector<16x16xf32>
    %208 = arith.mulf %207, %193 : vector<16x16xf32>
    %209 = arith.addf %191, %208 : vector<16x16xf32>
    %c1_65 = arith.constant 1 : index
    %c0_66 = arith.constant 0 : index
    %c1_67 = arith.constant 1 : index
    %210 = vector.load %arg5[%c1_65, %c0_66, %c1_67] : memref<4x18x18xf32, #tpu.memory_space<vmem>>, vector<1x16x16xf32>
    %211 = vector.shape_cast %210 : vector<1x16x16xf32> to vector<16x16xf32>
    %c10 = arith.constant 10 : index
    %212 = memref.load %arg2[%c10] : memref<144xf32, #tpu.memory_space<smem>>
    %213 = vector.broadcast %212 : f32 to vector<16x16xf32>
    %214 = arith.mulf %213, %211 : vector<16x16xf32>
    %215 = arith.addf %197, %214 : vector<16x16xf32>
    %c46 = arith.constant 46 : index
    %216 = memref.load %arg2[%c46] : memref<144xf32, #tpu.memory_space<smem>>
    %217 = vector.broadcast %216 : f32 to vector<16x16xf32>
    %218 = arith.mulf %217, %211 : vector<16x16xf32>
    %219 = arith.addf %201, %218 : vector<16x16xf32>
    %c82 = arith.constant 82 : index
    %220 = memref.load %arg2[%c82] : memref<144xf32, #tpu.memory_space<smem>>
    %221 = vector.broadcast %220 : f32 to vector<16x16xf32>
    %222 = arith.mulf %221, %211 : vector<16x16xf32>
    %223 = arith.addf %205, %222 : vector<16x16xf32>
    %c118 = arith.constant 118 : index
    %224 = memref.load %arg2[%c118] : memref<144xf32, #tpu.memory_space<smem>>
    %225 = vector.broadcast %224 : f32 to vector<16x16xf32>
    %226 = arith.mulf %225, %211 : vector<16x16xf32>
    %227 = arith.addf %209, %226 : vector<16x16xf32>
    %c1_68 = arith.constant 1 : index
    %c0_69 = arith.constant 0 : index
    %c2_70 = arith.constant 2 : index
    %228 = vector.load %arg5[%c1_68, %c0_69, %c2_70] : memref<4x18x18xf32, #tpu.memory_space<vmem>>, vector<1x16x16xf32>
    %229 = vector.shape_cast %228 : vector<1x16x16xf32> to vector<16x16xf32>
    %c11 = arith.constant 11 : index
    %230 = memref.load %arg2[%c11] : memref<144xf32, #tpu.memory_space<smem>>
    %231 = vector.broadcast %230 : f32 to vector<16x16xf32>
    %232 = arith.mulf %231, %229 : vector<16x16xf32>
    %233 = arith.addf %215, %232 : vector<16x16xf32>
    %c47 = arith.constant 47 : index
    %234 = memref.load %arg2[%c47] : memref<144xf32, #tpu.memory_space<smem>>
    %235 = vector.broadcast %234 : f32 to vector<16x16xf32>
    %236 = arith.mulf %235, %229 : vector<16x16xf32>
    %237 = arith.addf %219, %236 : vector<16x16xf32>
    %c83 = arith.constant 83 : index
    %238 = memref.load %arg2[%c83] : memref<144xf32, #tpu.memory_space<smem>>
    %239 = vector.broadcast %238 : f32 to vector<16x16xf32>
    %240 = arith.mulf %239, %229 : vector<16x16xf32>
    %241 = arith.addf %223, %240 : vector<16x16xf32>
    %c119 = arith.constant 119 : index
    %242 = memref.load %arg2[%c119] : memref<144xf32, #tpu.memory_space<smem>>
    %243 = vector.broadcast %242 : f32 to vector<16x16xf32>
    %244 = arith.mulf %243, %229 : vector<16x16xf32>
    %245 = arith.addf %227, %244 : vector<16x16xf32>
    %c1_71 = arith.constant 1 : index
    %c1_72 = arith.constant 1 : index
    %c0_73 = arith.constant 0 : index
    %246 = vector.load %arg5[%c1_71, %c1_72, %c0_73] : memref<4x18x18xf32, #tpu.memory_space<vmem>>, vector<1x16x16xf32>
    %247 = vector.shape_cast %246 : vector<1x16x16xf32> to vector<16x16xf32>
    %c12 = arith.constant 12 : index
    %248 = memref.load %arg2[%c12] : memref<144xf32, #tpu.memory_space<smem>>
    %249 = vector.broadcast %248 : f32 to vector<16x16xf32>
    %250 = arith.mulf %249, %247 : vector<16x16xf32>
    %251 = arith.addf %233, %250 : vector<16x16xf32>
    %c48 = arith.constant 48 : index
    %252 = memref.load %arg2[%c48] : memref<144xf32, #tpu.memory_space<smem>>
    %253 = vector.broadcast %252 : f32 to vector<16x16xf32>
    %254 = arith.mulf %253, %247 : vector<16x16xf32>
    %255 = arith.addf %237, %254 : vector<16x16xf32>
    %c84 = arith.constant 84 : index
    %256 = memref.load %arg2[%c84] : memref<144xf32, #tpu.memory_space<smem>>
    %257 = vector.broadcast %256 : f32 to vector<16x16xf32>
    %258 = arith.mulf %257, %247 : vector<16x16xf32>
    %259 = arith.addf %241, %258 : vector<16x16xf32>
    %c120 = arith.constant 120 : index
    %260 = memref.load %arg2[%c120] : memref<144xf32, #tpu.memory_space<smem>>
    %261 = vector.broadcast %260 : f32 to vector<16x16xf32>
    %262 = arith.mulf %261, %247 : vector<16x16xf32>
    %263 = arith.addf %245, %262 : vector<16x16xf32>
    %c1_74 = arith.constant 1 : index
    %c1_75 = arith.constant 1 : index
    %c1_76 = arith.constant 1 : index
    %264 = vector.load %arg5[%c1_74, %c1_75, %c1_76] : memref<4x18x18xf32, #tpu.memory_space<vmem>>, vector<1x16x16xf32>
    %265 = vector.shape_cast %264 : vector<1x16x16xf32> to vector<16x16xf32>
    %c13 = arith.constant 13 : index
    %266 = memref.load %arg2[%c13] : memref<144xf32, #tpu.memory_space<smem>>
    %267 = vector.broadcast %266 : f32 to vector<16x16xf32>
    %268 = arith.mulf %267, %265 : vector<16x16xf32>
    %269 = arith.addf %251, %268 : vector<16x16xf32>
    %c49 = arith.constant 49 : index
    %270 = memref.load %arg2[%c49] : memref<144xf32, #tpu.memory_space<smem>>
    %271 = vector.broadcast %270 : f32 to vector<16x16xf32>
    %272 = arith.mulf %271, %265 : vector<16x16xf32>
    %273 = arith.addf %255, %272 : vector<16x16xf32>
    %c85 = arith.constant 85 : index
    %274 = memref.load %arg2[%c85] : memref<144xf32, #tpu.memory_space<smem>>
    %275 = vector.broadcast %274 : f32 to vector<16x16xf32>
    %276 = arith.mulf %275, %265 : vector<16x16xf32>
    %277 = arith.addf %259, %276 : vector<16x16xf32>
    %c121 = arith.constant 121 : index
    %278 = memref.load %arg2[%c121] : memref<144xf32, #tpu.memory_space<smem>>
    %279 = vector.broadcast %278 : f32 to vector<16x16xf32>
    %280 = arith.mulf %279, %265 : vector<16x16xf32>
    %281 = arith.addf %263, %280 : vector<16x16xf32>
    %c1_77 = arith.constant 1 : index
    %c1_78 = arith.constant 1 : index
    %c2_79 = arith.constant 2 : index
    %282 = vector.load %arg5[%c1_77, %c1_78, %c2_79] : memref<4x18x18xf32, #tpu.memory_space<vmem>>, vector<1x16x16xf32>
    %283 = vector.shape_cast %282 : vector<1x16x16xf32> to vector<16x16xf32>
    %c14 = arith.constant 14 : index
    %284 = memref.load %arg2[%c14] : memref<144xf32, #tpu.memory_space<smem>>
    %285 = vector.broadcast %284 : f32 to vector<16x16xf32>
    %286 = arith.mulf %285, %283 : vector<16x16xf32>
    %287 = arith.addf %269, %286 : vector<16x16xf32>
    %c50 = arith.constant 50 : index
    %288 = memref.load %arg2[%c50] : memref<144xf32, #tpu.memory_space<smem>>
    %289 = vector.broadcast %288 : f32 to vector<16x16xf32>
    %290 = arith.mulf %289, %283 : vector<16x16xf32>
    %291 = arith.addf %273, %290 : vector<16x16xf32>
    %c86 = arith.constant 86 : index
    %292 = memref.load %arg2[%c86] : memref<144xf32, #tpu.memory_space<smem>>
    %293 = vector.broadcast %292 : f32 to vector<16x16xf32>
    %294 = arith.mulf %293, %283 : vector<16x16xf32>
    %295 = arith.addf %277, %294 : vector<16x16xf32>
    %c122 = arith.constant 122 : index
    %296 = memref.load %arg2[%c122] : memref<144xf32, #tpu.memory_space<smem>>
    %297 = vector.broadcast %296 : f32 to vector<16x16xf32>
    %298 = arith.mulf %297, %283 : vector<16x16xf32>
    %299 = arith.addf %281, %298 : vector<16x16xf32>
    %c1_80 = arith.constant 1 : index
    %c2_81 = arith.constant 2 : index
    %c0_82 = arith.constant 0 : index
    %300 = vector.load %arg5[%c1_80, %c2_81, %c0_82] : memref<4x18x18xf32, #tpu.memory_space<vmem>>, vector<1x16x16xf32>
    %301 = vector.shape_cast %300 : vector<1x16x16xf32> to vector<16x16xf32>
    %c15 = arith.constant 15 : index
    %302 = memref.load %arg2[%c15] : memref<144xf32, #tpu.memory_space<smem>>
    %303 = vector.broadcast %302 : f32 to vector<16x16xf32>
    %304 = arith.mulf %303, %301 : vector<16x16xf32>
    %305 = arith.addf %287, %304 : vector<16x16xf32>
    %c51 = arith.constant 51 : index
    %306 = memref.load %arg2[%c51] : memref<144xf32, #tpu.memory_space<smem>>
    %307 = vector.broadcast %306 : f32 to vector<16x16xf32>
    %308 = arith.mulf %307, %301 : vector<16x16xf32>
    %309 = arith.addf %291, %308 : vector<16x16xf32>
    %c87 = arith.constant 87 : index
    %310 = memref.load %arg2[%c87] : memref<144xf32, #tpu.memory_space<smem>>
    %311 = vector.broadcast %310 : f32 to vector<16x16xf32>
    %312 = arith.mulf %311, %301 : vector<16x16xf32>
    %313 = arith.addf %295, %312 : vector<16x16xf32>
    %c123 = arith.constant 123 : index
    %314 = memref.load %arg2[%c123] : memref<144xf32, #tpu.memory_space<smem>>
    %315 = vector.broadcast %314 : f32 to vector<16x16xf32>
    %316 = arith.mulf %315, %301 : vector<16x16xf32>
    %317 = arith.addf %299, %316 : vector<16x16xf32>
    %c1_83 = arith.constant 1 : index
    %c2_84 = arith.constant 2 : index
    %c1_85 = arith.constant 1 : index
    %318 = vector.load %arg5[%c1_83, %c2_84, %c1_85] : memref<4x18x18xf32, #tpu.memory_space<vmem>>, vector<1x16x16xf32>
    %319 = vector.shape_cast %318 : vector<1x16x16xf32> to vector<16x16xf32>
    %c16 = arith.constant 16 : index
    %320 = memref.load %arg2[%c16] : memref<144xf32, #tpu.memory_space<smem>>
    %321 = vector.broadcast %320 : f32 to vector<16x16xf32>
    %322 = arith.mulf %321, %319 : vector<16x16xf32>
    %323 = arith.addf %305, %322 : vector<16x16xf32>
    %c52 = arith.constant 52 : index
    %324 = memref.load %arg2[%c52] : memref<144xf32, #tpu.memory_space<smem>>
    %325 = vector.broadcast %324 : f32 to vector<16x16xf32>
    %326 = arith.mulf %325, %319 : vector<16x16xf32>
    %327 = arith.addf %309, %326 : vector<16x16xf32>
    %c88 = arith.constant 88 : index
    %328 = memref.load %arg2[%c88] : memref<144xf32, #tpu.memory_space<smem>>
    %329 = vector.broadcast %328 : f32 to vector<16x16xf32>
    %330 = arith.mulf %329, %319 : vector<16x16xf32>
    %331 = arith.addf %313, %330 : vector<16x16xf32>
    %c124 = arith.constant 124 : index
    %332 = memref.load %arg2[%c124] : memref<144xf32, #tpu.memory_space<smem>>
    %333 = vector.broadcast %332 : f32 to vector<16x16xf32>
    %334 = arith.mulf %333, %319 : vector<16x16xf32>
    %335 = arith.addf %317, %334 : vector<16x16xf32>
    %c1_86 = arith.constant 1 : index
    %c2_87 = arith.constant 2 : index
    %c2_88 = arith.constant 2 : index
    %336 = vector.load %arg5[%c1_86, %c2_87, %c2_88] : memref<4x18x18xf32, #tpu.memory_space<vmem>>, vector<1x16x16xf32>
    %337 = vector.shape_cast %336 : vector<1x16x16xf32> to vector<16x16xf32>
    %c17 = arith.constant 17 : index
    %338 = memref.load %arg2[%c17] : memref<144xf32, #tpu.memory_space<smem>>
    %339 = vector.broadcast %338 : f32 to vector<16x16xf32>
    %340 = arith.mulf %339, %337 : vector<16x16xf32>
    %341 = arith.addf %323, %340 : vector<16x16xf32>
    %c53 = arith.constant 53 : index
    %342 = memref.load %arg2[%c53] : memref<144xf32, #tpu.memory_space<smem>>
    %343 = vector.broadcast %342 : f32 to vector<16x16xf32>
    %344 = arith.mulf %343, %337 : vector<16x16xf32>
    %345 = arith.addf %327, %344 : vector<16x16xf32>
    %c89 = arith.constant 89 : index
    %346 = memref.load %arg2[%c89] : memref<144xf32, #tpu.memory_space<smem>>
    %347 = vector.broadcast %346 : f32 to vector<16x16xf32>
    %348 = arith.mulf %347, %337 : vector<16x16xf32>
    %349 = arith.addf %331, %348 : vector<16x16xf32>
    %c125 = arith.constant 125 : index
    %350 = memref.load %arg2[%c125] : memref<144xf32, #tpu.memory_space<smem>>
    %351 = vector.broadcast %350 : f32 to vector<16x16xf32>
    %352 = arith.mulf %351, %337 : vector<16x16xf32>
    %353 = arith.addf %335, %352 : vector<16x16xf32>
    %c2_89 = arith.constant 2 : index
    %c0_90 = arith.constant 0 : index
    %c0_91 = arith.constant 0 : index
    %354 = vector.load %arg5[%c2_89, %c0_90, %c0_91] : memref<4x18x18xf32, #tpu.memory_space<vmem>>, vector<1x16x16xf32>
    %355 = vector.shape_cast %354 : vector<1x16x16xf32> to vector<16x16xf32>
    %c18 = arith.constant 18 : index
    %356 = memref.load %arg2[%c18] : memref<144xf32, #tpu.memory_space<smem>>
    %357 = vector.broadcast %356 : f32 to vector<16x16xf32>
    %358 = arith.mulf %357, %355 : vector<16x16xf32>
    %359 = arith.addf %341, %358 : vector<16x16xf32>
    %c54 = arith.constant 54 : index
    %360 = memref.load %arg2[%c54] : memref<144xf32, #tpu.memory_space<smem>>
    %361 = vector.broadcast %360 : f32 to vector<16x16xf32>
    %362 = arith.mulf %361, %355 : vector<16x16xf32>
    %363 = arith.addf %345, %362 : vector<16x16xf32>
    %c90 = arith.constant 90 : index
    %364 = memref.load %arg2[%c90] : memref<144xf32, #tpu.memory_space<smem>>
    %365 = vector.broadcast %364 : f32 to vector<16x16xf32>
    %366 = arith.mulf %365, %355 : vector<16x16xf32>
    %367 = arith.addf %349, %366 : vector<16x16xf32>
    %c126 = arith.constant 126 : index
    %368 = memref.load %arg2[%c126] : memref<144xf32, #tpu.memory_space<smem>>
    %369 = vector.broadcast %368 : f32 to vector<16x16xf32>
    %370 = arith.mulf %369, %355 : vector<16x16xf32>
    %371 = arith.addf %353, %370 : vector<16x16xf32>
    %c2_92 = arith.constant 2 : index
    %c0_93 = arith.constant 0 : index
    %c1_94 = arith.constant 1 : index
    %372 = vector.load %arg5[%c2_92, %c0_93, %c1_94] : memref<4x18x18xf32, #tpu.memory_space<vmem>>, vector<1x16x16xf32>
    %373 = vector.shape_cast %372 : vector<1x16x16xf32> to vector<16x16xf32>
    %c19 = arith.constant 19 : index
    %374 = memref.load %arg2[%c19] : memref<144xf32, #tpu.memory_space<smem>>
    %375 = vector.broadcast %374 : f32 to vector<16x16xf32>
    %376 = arith.mulf %375, %373 : vector<16x16xf32>
    %377 = arith.addf %359, %376 : vector<16x16xf32>
    %c55 = arith.constant 55 : index
    %378 = memref.load %arg2[%c55] : memref<144xf32, #tpu.memory_space<smem>>
    %379 = vector.broadcast %378 : f32 to vector<16x16xf32>
    %380 = arith.mulf %379, %373 : vector<16x16xf32>
    %381 = arith.addf %363, %380 : vector<16x16xf32>
    %c91 = arith.constant 91 : index
    %382 = memref.load %arg2[%c91] : memref<144xf32, #tpu.memory_space<smem>>
    %383 = vector.broadcast %382 : f32 to vector<16x16xf32>
    %384 = arith.mulf %383, %373 : vector<16x16xf32>
    %385 = arith.addf %367, %384 : vector<16x16xf32>
    %c127 = arith.constant 127 : index
    %386 = memref.load %arg2[%c127] : memref<144xf32, #tpu.memory_space<smem>>
    %387 = vector.broadcast %386 : f32 to vector<16x16xf32>
    %388 = arith.mulf %387, %373 : vector<16x16xf32>
    %389 = arith.addf %371, %388 : vector<16x16xf32>
    %c2_95 = arith.constant 2 : index
    %c0_96 = arith.constant 0 : index
    %c2_97 = arith.constant 2 : index
    %390 = vector.load %arg5[%c2_95, %c0_96, %c2_97] : memref<4x18x18xf32, #tpu.memory_space<vmem>>, vector<1x16x16xf32>
    %391 = vector.shape_cast %390 : vector<1x16x16xf32> to vector<16x16xf32>
    %c20 = arith.constant 20 : index
    %392 = memref.load %arg2[%c20] : memref<144xf32, #tpu.memory_space<smem>>
    %393 = vector.broadcast %392 : f32 to vector<16x16xf32>
    %394 = arith.mulf %393, %391 : vector<16x16xf32>
    %395 = arith.addf %377, %394 : vector<16x16xf32>
    %c56 = arith.constant 56 : index
    %396 = memref.load %arg2[%c56] : memref<144xf32, #tpu.memory_space<smem>>
    %397 = vector.broadcast %396 : f32 to vector<16x16xf32>
    %398 = arith.mulf %397, %391 : vector<16x16xf32>
    %399 = arith.addf %381, %398 : vector<16x16xf32>
    %c92 = arith.constant 92 : index
    %400 = memref.load %arg2[%c92] : memref<144xf32, #tpu.memory_space<smem>>
    %401 = vector.broadcast %400 : f32 to vector<16x16xf32>
    %402 = arith.mulf %401, %391 : vector<16x16xf32>
    %403 = arith.addf %385, %402 : vector<16x16xf32>
    %c128 = arith.constant 128 : index
    %404 = memref.load %arg2[%c128] : memref<144xf32, #tpu.memory_space<smem>>
    %405 = vector.broadcast %404 : f32 to vector<16x16xf32>
    %406 = arith.mulf %405, %391 : vector<16x16xf32>
    %407 = arith.addf %389, %406 : vector<16x16xf32>
    %c2_98 = arith.constant 2 : index
    %c1_99 = arith.constant 1 : index
    %c0_100 = arith.constant 0 : index
    %408 = vector.load %arg5[%c2_98, %c1_99, %c0_100] : memref<4x18x18xf32, #tpu.memory_space<vmem>>, vector<1x16x16xf32>
    %409 = vector.shape_cast %408 : vector<1x16x16xf32> to vector<16x16xf32>
    %c21 = arith.constant 21 : index
    %410 = memref.load %arg2[%c21] : memref<144xf32, #tpu.memory_space<smem>>
    %411 = vector.broadcast %410 : f32 to vector<16x16xf32>
    %412 = arith.mulf %411, %409 : vector<16x16xf32>
    %413 = arith.addf %395, %412 : vector<16x16xf32>
    %c57 = arith.constant 57 : index
    %414 = memref.load %arg2[%c57] : memref<144xf32, #tpu.memory_space<smem>>
    %415 = vector.broadcast %414 : f32 to vector<16x16xf32>
    %416 = arith.mulf %415, %409 : vector<16x16xf32>
    %417 = arith.addf %399, %416 : vector<16x16xf32>
    %c93 = arith.constant 93 : index
    %418 = memref.load %arg2[%c93] : memref<144xf32, #tpu.memory_space<smem>>
    %419 = vector.broadcast %418 : f32 to vector<16x16xf32>
    %420 = arith.mulf %419, %409 : vector<16x16xf32>
    %421 = arith.addf %403, %420 : vector<16x16xf32>
    %c129 = arith.constant 129 : index
    %422 = memref.load %arg2[%c129] : memref<144xf32, #tpu.memory_space<smem>>
    %423 = vector.broadcast %422 : f32 to vector<16x16xf32>
    %424 = arith.mulf %423, %409 : vector<16x16xf32>
    %425 = arith.addf %407, %424 : vector<16x16xf32>
    %c2_101 = arith.constant 2 : index
    %c1_102 = arith.constant 1 : index
    %c1_103 = arith.constant 1 : index
    %426 = vector.load %arg5[%c2_101, %c1_102, %c1_103] : memref<4x18x18xf32, #tpu.memory_space<vmem>>, vector<1x16x16xf32>
    %427 = vector.shape_cast %426 : vector<1x16x16xf32> to vector<16x16xf32>
    %c22 = arith.constant 22 : index
    %428 = memref.load %arg2[%c22] : memref<144xf32, #tpu.memory_space<smem>>
    %429 = vector.broadcast %428 : f32 to vector<16x16xf32>
    %430 = arith.mulf %429, %427 : vector<16x16xf32>
    %431 = arith.addf %413, %430 : vector<16x16xf32>
    %c58 = arith.constant 58 : index
    %432 = memref.load %arg2[%c58] : memref<144xf32, #tpu.memory_space<smem>>
    %433 = vector.broadcast %432 : f32 to vector<16x16xf32>
    %434 = arith.mulf %433, %427 : vector<16x16xf32>
    %435 = arith.addf %417, %434 : vector<16x16xf32>
    %c94 = arith.constant 94 : index
    %436 = memref.load %arg2[%c94] : memref<144xf32, #tpu.memory_space<smem>>
    %437 = vector.broadcast %436 : f32 to vector<16x16xf32>
    %438 = arith.mulf %437, %427 : vector<16x16xf32>
    %439 = arith.addf %421, %438 : vector<16x16xf32>
    %c130 = arith.constant 130 : index
    %440 = memref.load %arg2[%c130] : memref<144xf32, #tpu.memory_space<smem>>
    %441 = vector.broadcast %440 : f32 to vector<16x16xf32>
    %442 = arith.mulf %441, %427 : vector<16x16xf32>
    %443 = arith.addf %425, %442 : vector<16x16xf32>
    %c2_104 = arith.constant 2 : index
    %c1_105 = arith.constant 1 : index
    %c2_106 = arith.constant 2 : index
    %444 = vector.load %arg5[%c2_104, %c1_105, %c2_106] : memref<4x18x18xf32, #tpu.memory_space<vmem>>, vector<1x16x16xf32>
    %445 = vector.shape_cast %444 : vector<1x16x16xf32> to vector<16x16xf32>
    %c23 = arith.constant 23 : index
    %446 = memref.load %arg2[%c23] : memref<144xf32, #tpu.memory_space<smem>>
    %447 = vector.broadcast %446 : f32 to vector<16x16xf32>
    %448 = arith.mulf %447, %445 : vector<16x16xf32>
    %449 = arith.addf %431, %448 : vector<16x16xf32>
    %c59 = arith.constant 59 : index
    %450 = memref.load %arg2[%c59] : memref<144xf32, #tpu.memory_space<smem>>
    %451 = vector.broadcast %450 : f32 to vector<16x16xf32>
    %452 = arith.mulf %451, %445 : vector<16x16xf32>
    %453 = arith.addf %435, %452 : vector<16x16xf32>
    %c95 = arith.constant 95 : index
    %454 = memref.load %arg2[%c95] : memref<144xf32, #tpu.memory_space<smem>>
    %455 = vector.broadcast %454 : f32 to vector<16x16xf32>
    %456 = arith.mulf %455, %445 : vector<16x16xf32>
    %457 = arith.addf %439, %456 : vector<16x16xf32>
    %c131 = arith.constant 131 : index
    %458 = memref.load %arg2[%c131] : memref<144xf32, #tpu.memory_space<smem>>
    %459 = vector.broadcast %458 : f32 to vector<16x16xf32>
    %460 = arith.mulf %459, %445 : vector<16x16xf32>
    %461 = arith.addf %443, %460 : vector<16x16xf32>
    %c2_107 = arith.constant 2 : index
    %c2_108 = arith.constant 2 : index
    %c0_109 = arith.constant 0 : index
    %462 = vector.load %arg5[%c2_107, %c2_108, %c0_109] : memref<4x18x18xf32, #tpu.memory_space<vmem>>, vector<1x16x16xf32>
    %463 = vector.shape_cast %462 : vector<1x16x16xf32> to vector<16x16xf32>
    %c24 = arith.constant 24 : index
    %464 = memref.load %arg2[%c24] : memref<144xf32, #tpu.memory_space<smem>>
    %465 = vector.broadcast %464 : f32 to vector<16x16xf32>
    %466 = arith.mulf %465, %463 : vector<16x16xf32>
    %467 = arith.addf %449, %466 : vector<16x16xf32>
    %c60 = arith.constant 60 : index
    %468 = memref.load %arg2[%c60] : memref<144xf32, #tpu.memory_space<smem>>
    %469 = vector.broadcast %468 : f32 to vector<16x16xf32>
    %470 = arith.mulf %469, %463 : vector<16x16xf32>
    %471 = arith.addf %453, %470 : vector<16x16xf32>
    %c96 = arith.constant 96 : index
    %472 = memref.load %arg2[%c96] : memref<144xf32, #tpu.memory_space<smem>>
    %473 = vector.broadcast %472 : f32 to vector<16x16xf32>
    %474 = arith.mulf %473, %463 : vector<16x16xf32>
    %475 = arith.addf %457, %474 : vector<16x16xf32>
    %c132 = arith.constant 132 : index
    %476 = memref.load %arg2[%c132] : memref<144xf32, #tpu.memory_space<smem>>
    %477 = vector.broadcast %476 : f32 to vector<16x16xf32>
    %478 = arith.mulf %477, %463 : vector<16x16xf32>
    %479 = arith.addf %461, %478 : vector<16x16xf32>
    %c2_110 = arith.constant 2 : index
    %c2_111 = arith.constant 2 : index
    %c1_112 = arith.constant 1 : index
    %480 = vector.load %arg5[%c2_110, %c2_111, %c1_112] : memref<4x18x18xf32, #tpu.memory_space<vmem>>, vector<1x16x16xf32>
    %481 = vector.shape_cast %480 : vector<1x16x16xf32> to vector<16x16xf32>
    %c25 = arith.constant 25 : index
    %482 = memref.load %arg2[%c25] : memref<144xf32, #tpu.memory_space<smem>>
    %483 = vector.broadcast %482 : f32 to vector<16x16xf32>
    %484 = arith.mulf %483, %481 : vector<16x16xf32>
    %485 = arith.addf %467, %484 : vector<16x16xf32>
    %c61 = arith.constant 61 : index
    %486 = memref.load %arg2[%c61] : memref<144xf32, #tpu.memory_space<smem>>
    %487 = vector.broadcast %486 : f32 to vector<16x16xf32>
    %488 = arith.mulf %487, %481 : vector<16x16xf32>
    %489 = arith.addf %471, %488 : vector<16x16xf32>
    %c97 = arith.constant 97 : index
    %490 = memref.load %arg2[%c97] : memref<144xf32, #tpu.memory_space<smem>>
    %491 = vector.broadcast %490 : f32 to vector<16x16xf32>
    %492 = arith.mulf %491, %481 : vector<16x16xf32>
    %493 = arith.addf %475, %492 : vector<16x16xf32>
    %c133 = arith.constant 133 : index
    %494 = memref.load %arg2[%c133] : memref<144xf32, #tpu.memory_space<smem>>
    %495 = vector.broadcast %494 : f32 to vector<16x16xf32>
    %496 = arith.mulf %495, %481 : vector<16x16xf32>
    %497 = arith.addf %479, %496 : vector<16x16xf32>
    %c2_113 = arith.constant 2 : index
    %c2_114 = arith.constant 2 : index
    %c2_115 = arith.constant 2 : index
    %498 = vector.load %arg5[%c2_113, %c2_114, %c2_115] : memref<4x18x18xf32, #tpu.memory_space<vmem>>, vector<1x16x16xf32>
    %499 = vector.shape_cast %498 : vector<1x16x16xf32> to vector<16x16xf32>
    %c26 = arith.constant 26 : index
    %500 = memref.load %arg2[%c26] : memref<144xf32, #tpu.memory_space<smem>>
    %501 = vector.broadcast %500 : f32 to vector<16x16xf32>
    %502 = arith.mulf %501, %499 : vector<16x16xf32>
    %503 = arith.addf %485, %502 : vector<16x16xf32>
    %c62 = arith.constant 62 : index
    %504 = memref.load %arg2[%c62] : memref<144xf32, #tpu.memory_space<smem>>
    %505 = vector.broadcast %504 : f32 to vector<16x16xf32>
    %506 = arith.mulf %505, %499 : vector<16x16xf32>
    %507 = arith.addf %489, %506 : vector<16x16xf32>
    %c98 = arith.constant 98 : index
    %508 = memref.load %arg2[%c98] : memref<144xf32, #tpu.memory_space<smem>>
    %509 = vector.broadcast %508 : f32 to vector<16x16xf32>
    %510 = arith.mulf %509, %499 : vector<16x16xf32>
    %511 = arith.addf %493, %510 : vector<16x16xf32>
    %c134 = arith.constant 134 : index
    %512 = memref.load %arg2[%c134] : memref<144xf32, #tpu.memory_space<smem>>
    %513 = vector.broadcast %512 : f32 to vector<16x16xf32>
    %514 = arith.mulf %513, %499 : vector<16x16xf32>
    %515 = arith.addf %497, %514 : vector<16x16xf32>
    %c3_116 = arith.constant 3 : index
    %c0_117 = arith.constant 0 : index
    %c0_118 = arith.constant 0 : index
    %516 = vector.load %arg5[%c3_116, %c0_117, %c0_118] : memref<4x18x18xf32, #tpu.memory_space<vmem>>, vector<1x16x16xf32>
    %517 = vector.shape_cast %516 : vector<1x16x16xf32> to vector<16x16xf32>
    %c27 = arith.constant 27 : index
    %518 = memref.load %arg2[%c27] : memref<144xf32, #tpu.memory_space<smem>>
    %519 = vector.broadcast %518 : f32 to vector<16x16xf32>
    %520 = arith.mulf %519, %517 : vector<16x16xf32>
    %521 = arith.addf %503, %520 : vector<16x16xf32>
    %c63 = arith.constant 63 : index
    %522 = memref.load %arg2[%c63] : memref<144xf32, #tpu.memory_space<smem>>
    %523 = vector.broadcast %522 : f32 to vector<16x16xf32>
    %524 = arith.mulf %523, %517 : vector<16x16xf32>
    %525 = arith.addf %507, %524 : vector<16x16xf32>
    %c99 = arith.constant 99 : index
    %526 = memref.load %arg2[%c99] : memref<144xf32, #tpu.memory_space<smem>>
    %527 = vector.broadcast %526 : f32 to vector<16x16xf32>
    %528 = arith.mulf %527, %517 : vector<16x16xf32>
    %529 = arith.addf %511, %528 : vector<16x16xf32>
    %c135 = arith.constant 135 : index
    %530 = memref.load %arg2[%c135] : memref<144xf32, #tpu.memory_space<smem>>
    %531 = vector.broadcast %530 : f32 to vector<16x16xf32>
    %532 = arith.mulf %531, %517 : vector<16x16xf32>
    %533 = arith.addf %515, %532 : vector<16x16xf32>
    %c3_119 = arith.constant 3 : index
    %c0_120 = arith.constant 0 : index
    %c1_121 = arith.constant 1 : index
    %534 = vector.load %arg5[%c3_119, %c0_120, %c1_121] : memref<4x18x18xf32, #tpu.memory_space<vmem>>, vector<1x16x16xf32>
    %535 = vector.shape_cast %534 : vector<1x16x16xf32> to vector<16x16xf32>
    %c28 = arith.constant 28 : index
    %536 = memref.load %arg2[%c28] : memref<144xf32, #tpu.memory_space<smem>>
    %537 = vector.broadcast %536 : f32 to vector<16x16xf32>
    %538 = arith.mulf %537, %535 : vector<16x16xf32>
    %539 = arith.addf %521, %538 : vector<16x16xf32>
    %c64 = arith.constant 64 : index
    %540 = memref.load %arg2[%c64] : memref<144xf32, #tpu.memory_space<smem>>
    %541 = vector.broadcast %540 : f32 to vector<16x16xf32>
    %542 = arith.mulf %541, %535 : vector<16x16xf32>
    %543 = arith.addf %525, %542 : vector<16x16xf32>
    %c100 = arith.constant 100 : index
    %544 = memref.load %arg2[%c100] : memref<144xf32, #tpu.memory_space<smem>>
    %545 = vector.broadcast %544 : f32 to vector<16x16xf32>
    %546 = arith.mulf %545, %535 : vector<16x16xf32>
    %547 = arith.addf %529, %546 : vector<16x16xf32>
    %c136 = arith.constant 136 : index
    %548 = memref.load %arg2[%c136] : memref<144xf32, #tpu.memory_space<smem>>
    %549 = vector.broadcast %548 : f32 to vector<16x16xf32>
    %550 = arith.mulf %549, %535 : vector<16x16xf32>
    %551 = arith.addf %533, %550 : vector<16x16xf32>
    %c3_122 = arith.constant 3 : index
    %c0_123 = arith.constant 0 : index
    %c2_124 = arith.constant 2 : index
    %552 = vector.load %arg5[%c3_122, %c0_123, %c2_124] : memref<4x18x18xf32, #tpu.memory_space<vmem>>, vector<1x16x16xf32>
    %553 = vector.shape_cast %552 : vector<1x16x16xf32> to vector<16x16xf32>
    %c29 = arith.constant 29 : index
    %554 = memref.load %arg2[%c29] : memref<144xf32, #tpu.memory_space<smem>>
    %555 = vector.broadcast %554 : f32 to vector<16x16xf32>
    %556 = arith.mulf %555, %553 : vector<16x16xf32>
    %557 = arith.addf %539, %556 : vector<16x16xf32>
    %c65 = arith.constant 65 : index
    %558 = memref.load %arg2[%c65] : memref<144xf32, #tpu.memory_space<smem>>
    %559 = vector.broadcast %558 : f32 to vector<16x16xf32>
    %560 = arith.mulf %559, %553 : vector<16x16xf32>
    %561 = arith.addf %543, %560 : vector<16x16xf32>
    %c101 = arith.constant 101 : index
    %562 = memref.load %arg2[%c101] : memref<144xf32, #tpu.memory_space<smem>>
    %563 = vector.broadcast %562 : f32 to vector<16x16xf32>
    %564 = arith.mulf %563, %553 : vector<16x16xf32>
    %565 = arith.addf %547, %564 : vector<16x16xf32>
    %c137 = arith.constant 137 : index
    %566 = memref.load %arg2[%c137] : memref<144xf32, #tpu.memory_space<smem>>
    %567 = vector.broadcast %566 : f32 to vector<16x16xf32>
    %568 = arith.mulf %567, %553 : vector<16x16xf32>
    %569 = arith.addf %551, %568 : vector<16x16xf32>
    %c3_125 = arith.constant 3 : index
    %c1_126 = arith.constant 1 : index
    %c0_127 = arith.constant 0 : index
    %570 = vector.load %arg5[%c3_125, %c1_126, %c0_127] : memref<4x18x18xf32, #tpu.memory_space<vmem>>, vector<1x16x16xf32>
    %571 = vector.shape_cast %570 : vector<1x16x16xf32> to vector<16x16xf32>
    %c30 = arith.constant 30 : index
    %572 = memref.load %arg2[%c30] : memref<144xf32, #tpu.memory_space<smem>>
    %573 = vector.broadcast %572 : f32 to vector<16x16xf32>
    %574 = arith.mulf %573, %571 : vector<16x16xf32>
    %575 = arith.addf %557, %574 : vector<16x16xf32>
    %c66 = arith.constant 66 : index
    %576 = memref.load %arg2[%c66] : memref<144xf32, #tpu.memory_space<smem>>
    %577 = vector.broadcast %576 : f32 to vector<16x16xf32>
    %578 = arith.mulf %577, %571 : vector<16x16xf32>
    %579 = arith.addf %561, %578 : vector<16x16xf32>
    %c102 = arith.constant 102 : index
    %580 = memref.load %arg2[%c102] : memref<144xf32, #tpu.memory_space<smem>>
    %581 = vector.broadcast %580 : f32 to vector<16x16xf32>
    %582 = arith.mulf %581, %571 : vector<16x16xf32>
    %583 = arith.addf %565, %582 : vector<16x16xf32>
    %c138 = arith.constant 138 : index
    %584 = memref.load %arg2[%c138] : memref<144xf32, #tpu.memory_space<smem>>
    %585 = vector.broadcast %584 : f32 to vector<16x16xf32>
    %586 = arith.mulf %585, %571 : vector<16x16xf32>
    %587 = arith.addf %569, %586 : vector<16x16xf32>
    %c3_128 = arith.constant 3 : index
    %c1_129 = arith.constant 1 : index
    %c1_130 = arith.constant 1 : index
    %588 = vector.load %arg5[%c3_128, %c1_129, %c1_130] : memref<4x18x18xf32, #tpu.memory_space<vmem>>, vector<1x16x16xf32>
    %589 = vector.shape_cast %588 : vector<1x16x16xf32> to vector<16x16xf32>
    %c31 = arith.constant 31 : index
    %590 = memref.load %arg2[%c31] : memref<144xf32, #tpu.memory_space<smem>>
    %591 = vector.broadcast %590 : f32 to vector<16x16xf32>
    %592 = arith.mulf %591, %589 : vector<16x16xf32>
    %593 = arith.addf %575, %592 : vector<16x16xf32>
    %c67 = arith.constant 67 : index
    %594 = memref.load %arg2[%c67] : memref<144xf32, #tpu.memory_space<smem>>
    %595 = vector.broadcast %594 : f32 to vector<16x16xf32>
    %596 = arith.mulf %595, %589 : vector<16x16xf32>
    %597 = arith.addf %579, %596 : vector<16x16xf32>
    %c103 = arith.constant 103 : index
    %598 = memref.load %arg2[%c103] : memref<144xf32, #tpu.memory_space<smem>>
    %599 = vector.broadcast %598 : f32 to vector<16x16xf32>
    %600 = arith.mulf %599, %589 : vector<16x16xf32>
    %601 = arith.addf %583, %600 : vector<16x16xf32>
    %c139 = arith.constant 139 : index
    %602 = memref.load %arg2[%c139] : memref<144xf32, #tpu.memory_space<smem>>
    %603 = vector.broadcast %602 : f32 to vector<16x16xf32>
    %604 = arith.mulf %603, %589 : vector<16x16xf32>
    %605 = arith.addf %587, %604 : vector<16x16xf32>
    %c3_131 = arith.constant 3 : index
    %c1_132 = arith.constant 1 : index
    %c2_133 = arith.constant 2 : index
    %606 = vector.load %arg5[%c3_131, %c1_132, %c2_133] : memref<4x18x18xf32, #tpu.memory_space<vmem>>, vector<1x16x16xf32>
    %607 = vector.shape_cast %606 : vector<1x16x16xf32> to vector<16x16xf32>
    %c32 = arith.constant 32 : index
    %608 = memref.load %arg2[%c32] : memref<144xf32, #tpu.memory_space<smem>>
    %609 = vector.broadcast %608 : f32 to vector<16x16xf32>
    %610 = arith.mulf %609, %607 : vector<16x16xf32>
    %611 = arith.addf %593, %610 : vector<16x16xf32>
    %c68 = arith.constant 68 : index
    %612 = memref.load %arg2[%c68] : memref<144xf32, #tpu.memory_space<smem>>
    %613 = vector.broadcast %612 : f32 to vector<16x16xf32>
    %614 = arith.mulf %613, %607 : vector<16x16xf32>
    %615 = arith.addf %597, %614 : vector<16x16xf32>
    %c104 = arith.constant 104 : index
    %616 = memref.load %arg2[%c104] : memref<144xf32, #tpu.memory_space<smem>>
    %617 = vector.broadcast %616 : f32 to vector<16x16xf32>
    %618 = arith.mulf %617, %607 : vector<16x16xf32>
    %619 = arith.addf %601, %618 : vector<16x16xf32>
    %c140 = arith.constant 140 : index
    %620 = memref.load %arg2[%c140] : memref<144xf32, #tpu.memory_space<smem>>
    %621 = vector.broadcast %620 : f32 to vector<16x16xf32>
    %622 = arith.mulf %621, %607 : vector<16x16xf32>
    %623 = arith.addf %605, %622 : vector<16x16xf32>
    %c3_134 = arith.constant 3 : index
    %c2_135 = arith.constant 2 : index
    %c0_136 = arith.constant 0 : index
    %624 = vector.load %arg5[%c3_134, %c2_135, %c0_136] : memref<4x18x18xf32, #tpu.memory_space<vmem>>, vector<1x16x16xf32>
    %625 = vector.shape_cast %624 : vector<1x16x16xf32> to vector<16x16xf32>
    %c33 = arith.constant 33 : index
    %626 = memref.load %arg2[%c33] : memref<144xf32, #tpu.memory_space<smem>>
    %627 = vector.broadcast %626 : f32 to vector<16x16xf32>
    %628 = arith.mulf %627, %625 : vector<16x16xf32>
    %629 = arith.addf %611, %628 : vector<16x16xf32>
    %c69 = arith.constant 69 : index
    %630 = memref.load %arg2[%c69] : memref<144xf32, #tpu.memory_space<smem>>
    %631 = vector.broadcast %630 : f32 to vector<16x16xf32>
    %632 = arith.mulf %631, %625 : vector<16x16xf32>
    %633 = arith.addf %615, %632 : vector<16x16xf32>
    %c105 = arith.constant 105 : index
    %634 = memref.load %arg2[%c105] : memref<144xf32, #tpu.memory_space<smem>>
    %635 = vector.broadcast %634 : f32 to vector<16x16xf32>
    %636 = arith.mulf %635, %625 : vector<16x16xf32>
    %637 = arith.addf %619, %636 : vector<16x16xf32>
    %c141 = arith.constant 141 : index
    %638 = memref.load %arg2[%c141] : memref<144xf32, #tpu.memory_space<smem>>
    %639 = vector.broadcast %638 : f32 to vector<16x16xf32>
    %640 = arith.mulf %639, %625 : vector<16x16xf32>
    %641 = arith.addf %623, %640 : vector<16x16xf32>
    %c3_137 = arith.constant 3 : index
    %c2_138 = arith.constant 2 : index
    %c1_139 = arith.constant 1 : index
    %642 = vector.load %arg5[%c3_137, %c2_138, %c1_139] : memref<4x18x18xf32, #tpu.memory_space<vmem>>, vector<1x16x16xf32>
    %643 = vector.shape_cast %642 : vector<1x16x16xf32> to vector<16x16xf32>
    %c34 = arith.constant 34 : index
    %644 = memref.load %arg2[%c34] : memref<144xf32, #tpu.memory_space<smem>>
    %645 = vector.broadcast %644 : f32 to vector<16x16xf32>
    %646 = arith.mulf %645, %643 : vector<16x16xf32>
    %647 = arith.addf %629, %646 : vector<16x16xf32>
    %c70 = arith.constant 70 : index
    %648 = memref.load %arg2[%c70] : memref<144xf32, #tpu.memory_space<smem>>
    %649 = vector.broadcast %648 : f32 to vector<16x16xf32>
    %650 = arith.mulf %649, %643 : vector<16x16xf32>
    %651 = arith.addf %633, %650 : vector<16x16xf32>
    %c106 = arith.constant 106 : index
    %652 = memref.load %arg2[%c106] : memref<144xf32, #tpu.memory_space<smem>>
    %653 = vector.broadcast %652 : f32 to vector<16x16xf32>
    %654 = arith.mulf %653, %643 : vector<16x16xf32>
    %655 = arith.addf %637, %654 : vector<16x16xf32>
    %c142 = arith.constant 142 : index
    %656 = memref.load %arg2[%c142] : memref<144xf32, #tpu.memory_space<smem>>
    %657 = vector.broadcast %656 : f32 to vector<16x16xf32>
    %658 = arith.mulf %657, %643 : vector<16x16xf32>
    %659 = arith.addf %641, %658 : vector<16x16xf32>
    %c3_140 = arith.constant 3 : index
    %c2_141 = arith.constant 2 : index
    %c2_142 = arith.constant 2 : index
    %660 = vector.load %arg5[%c3_140, %c2_141, %c2_142] : memref<4x18x18xf32, #tpu.memory_space<vmem>>, vector<1x16x16xf32>
    %661 = vector.shape_cast %660 : vector<1x16x16xf32> to vector<16x16xf32>
    %c35 = arith.constant 35 : index
    %662 = memref.load %arg2[%c35] : memref<144xf32, #tpu.memory_space<smem>>
    %663 = vector.broadcast %662 : f32 to vector<16x16xf32>
    %664 = arith.mulf %663, %661 : vector<16x16xf32>
    %665 = arith.addf %647, %664 : vector<16x16xf32>
    %c71 = arith.constant 71 : index
    %666 = memref.load %arg2[%c71] : memref<144xf32, #tpu.memory_space<smem>>
    %667 = vector.broadcast %666 : f32 to vector<16x16xf32>
    %668 = arith.mulf %667, %661 : vector<16x16xf32>
    %669 = arith.addf %651, %668 : vector<16x16xf32>
    %c107 = arith.constant 107 : index
    %670 = memref.load %arg2[%c107] : memref<144xf32, #tpu.memory_space<smem>>
    %671 = vector.broadcast %670 : f32 to vector<16x16xf32>
    %672 = arith.mulf %671, %661 : vector<16x16xf32>
    %673 = arith.addf %655, %672 : vector<16x16xf32>
    %c143 = arith.constant 143 : index
    %674 = memref.load %arg2[%c143] : memref<144xf32, #tpu.memory_space<smem>>
    %675 = vector.broadcast %674 : f32 to vector<16x16xf32>
    %676 = arith.mulf %675, %661 : vector<16x16xf32>
    %677 = arith.addf %659, %676 : vector<16x16xf32>
    %cst_143 = arith.constant 0.000000e+00 : f32
    %678 = vector.broadcast %cst_143 : f32 to vector<16x16xf32>
    %679 = arith.maximumf %665, %678 : vector<16x16xf32>
    %cst_144 = arith.constant 0.000000e+00 : f32
    %680 = vector.broadcast %cst_144 : f32 to vector<16x16xf32>
    %681 = arith.maximumf %669, %680 : vector<16x16xf32>
    %cst_145 = arith.constant 0.000000e+00 : f32
    %682 = vector.broadcast %cst_145 : f32 to vector<16x16xf32>
    %683 = arith.maximumf %673, %682 : vector<16x16xf32>
    %cst_146 = arith.constant 0.000000e+00 : f32
    %684 = vector.broadcast %cst_146 : f32 to vector<16x16xf32>
    %685 = arith.maximumf %677, %684 : vector<16x16xf32>
    %c0_147 = arith.constant 0 : index
    %c0_148 = arith.constant 0 : index
    %c0_149 = arith.constant 0 : index
    %c0_150 = arith.constant 0 : index
    %686 = vector.load %arg4[%c0_147, %c0_148, %c0_149, %c0_150] : memref<1x4x16x16xf32, #tpu.memory_space<vmem>>, vector<1x1x16x16xf32>
    %687 = vector.shape_cast %686 : vector<1x1x16x16xf32> to vector<16x16xf32>
    %688 = vector.shape_cast %679 : vector<16x16xf32> to vector<1x1x16x16xf32>
    tpu.vector_store %arg4[%c0_147, %c0_148, %c0_149, %c0_150], %688 {strides = array<i32>} : memref<1x4x16x16xf32, #tpu.memory_space<vmem>>, vector<1x1x16x16xf32>,
    %c0_151 = arith.constant 0 : index
    %c1_152 = arith.constant 1 : index
    %c0_153 = arith.constant 0 : index
    %c0_154 = arith.constant 0 : index
    %689 = vector.load %arg4[%c0_151, %c1_152, %c0_153, %c0_154] : memref<1x4x16x16xf32, #tpu.memory_space<vmem>>, vector<1x1x16x16xf32>
    %690 = vector.shape_cast %689 : vector<1x1x16x16xf32> to vector<16x16xf32>
    %691 = vector.shape_cast %681 : vector<16x16xf32> to vector<1x1x16x16xf32>
    tpu.vector_store %arg4[%c0_151, %c1_152, %c0_153, %c0_154], %691 {strides = array<i32>} : memref<1x4x16x16xf32, #tpu.memory_space<vmem>>, vector<1x1x16x16xf32>,
    %c0_155 = arith.constant 0 : index
    %c2_156 = arith.constant 2 : index
    %c0_157 = arith.constant 0 : index
    %c0_158 = arith.constant 0 : index
    %692 = vector.load %arg4[%c0_155, %c2_156, %c0_157, %c0_158] : memref<1x4x16x16xf32, #tpu.memory_space<vmem>>, vector<1x1x16x16xf32>
    %693 = vector.shape_cast %692 : vector<1x1x16x16xf32> to vector<16x16xf32>
    %694 = vector.shape_cast %683 : vector<16x16xf32> to vector<1x1x16x16xf32>
    tpu.vector_store %arg4[%c0_155, %c2_156, %c0_157, %c0_158], %694 {strides = array<i32>} : memref<1x4x16x16xf32, #tpu.memory_space<vmem>>, vector<1x1x16x16xf32>,
    %c0_159 = arith.constant 0 : index
    %c3_160 = arith.constant 3 : index
    %c0_161 = arith.constant 0 : index
    %c0_162 = arith.constant 0 : index
    %695 = vector.load %arg4[%c0_159, %c3_160, %c0_161, %c0_162] : memref<1x4x16x16xf32, #tpu.memory_space<vmem>>, vector<1x1x16x16xf32>
    %696 = vector.shape_cast %695 : vector<1x1x16x16xf32> to vector<16x16xf32>
    %697 = vector.shape_cast %685 : vector<16x16xf32> to vector<1x1x16x16xf32>
    tpu.vector_store %arg4[%c0_159, %c3_160, %c0_161, %c0_162], %697 {strides = array<i32>} : memref<1x4x16x16xf32, #tpu.memory_space<vmem>>, vector<1x1x16x16xf32>,
    return
  }
  func.func @transform_0(%arg0: i32) -> (i32, i32, i32, i32) {
    %c0_i32 = arith.constant 0 : i32
    %c0_i32_0 = arith.constant 0 : i32
    %c0_i32_1 = arith.constant 0 : i32
    %c0_i32_2 = arith.constant 0 : i32
    return %arg0, %c0_i32, %c0_i32_0, %c0_i32_1 : i32, i32, i32, i32
  }
  func.func @transform_1(%arg0: i32) -> i32 {
    %c0_i32 = arith.constant 0 : i32
    %c0_i32_0 = arith.constant 0 : i32
    return %c0_i32 : i32
  }
  func.func @transform_2(%arg0: i32) -> i32 {
    %c0_i32 = arith.constant 0 : i32
    %c0_i32_0 = arith.constant 0 : i32
    return %c0_i32 : i32
  }
  func.func @transform_3(%arg0: i32) -> (i32, i32, i32, i32) {
    %c0_i32 = arith.constant 0 : i32
    %c0_i32_0 = arith.constant 0 : i32
    %c0_i32_1 = arith.constant 0 : i32
    %c0_i32_2 = arith.constant 0 : i32
    return %arg0, %c0_i32, %c0_i32_0, %c0_i32_1 : i32, i32, i32, i32
  }
}

</mosaic_0001>

<llo_original>
// kernel: conv_relu_block.1
$region0: #{conv_relu_block.1}
  #allocation0 [shape = 'u32[]', space=smem, size = 0x4, offset = 0x4, fixed_abs, tag = 'smem constant byte address 0x4 - core index']
  #allocation1 [shape = 'u32[144,128]{1,0:T(1,128)}', space=vmem, size = 0x12000, scoped, tag = 'internal scratch']
  #allocation2 [shape = 'f32[4,18,18]{2,1,0:T(8,128)}', space=vmem, size = 0xc000, scoped, tag = 'scratch operand']
  %s0 = inlined_call_operand.vmem [shape: f32[2,4,16,16], index: 0, kind: input, shape index: {}]
  %s1 = inlined_call_operand.vmem [shape: f32[144], index: 1, kind: input, shape index: {}]
  %s2 = inlined_call_operand.vmem [shape: f32[4], index: 2, kind: input, shape index: {}]
  %s3 = inlined_call_operand.hbm [shape: f32[2,4,16,16], index: 3, kind: output, shape index: {}]
  %s4 = sld [smem:[#allocation0]]
  $region53: #{conv_relu_block.1} parent=0
    _
  %s6 = ssub.s32 1, %s4
  %s7 = scalar_select 0, %s6, %s4
  $region1: #{conv_relu_block.1} parent=0
    #allocation3 [shape = 'u8[1024]{0}', space=smem, size = 0x400, scoped, tag = 'input window, operand 1, single buffered']
    #allocation4 [shape = 's32[2]{0}', space=sflag, size = 0x8, scoped, tag = 'scoped memory for conv_relu_block.1']
    #allocation5 [shape = 's32[2]{0}', space=sflag, size = 0x8, scoped, tag = 'scoped memory for conv_relu_block.1']
    #allocation6 [shape = 'u8[512]{0}', space=smem, size = 0x200, scoped, tag = 'input window, operand 2, single buffered']
    #allocation7 [shape = 's32[1]{0}', space=sflag, size = 0x4, scoped, tag = 'scoped memory for conv_relu_block.1']
    #allocation8 [shape = 'u8[65536]{0}', space=vmem, size = 0x10000, scoped, tag = 'output window, operand 0']
    %8 = vsyncpa [#allocation5], 0
    %9 = vsyncpa [#allocation7], 0
    %10 = vsyncpa [#allocation4], 0
    %s11 = scalar_lea.sflag [#allocation4], 1
    %12 = vsyncpa %s11, 0
    loop: start=0, step=1, limit=4
    $region2: #{conv_relu_block.1} parent=1 // loop_pre_header
      _
    $region3: #{conv_relu_block.1} parent=1 // loop_header
      %s14 = sphi 0, %s18
      %p15 = scmp.ge.s32.totalorder %s14, 4
      %s24 = sphi 0, %s26
      %s27 = sphi 0, %s24
      %s28 = sphi 0, %s27
      %s44 = sphi 0, %s28
      %s48 = sphi 0, %s48
      %s50 = sphi 0, %s48
      %s51 = sphi 0, %s50
      %s65 = sphi 0, %s51
      %s69 = sphi 0, %s69
      %s71 = sphi 0, %s69
      %s72 = sphi 0, %s71
      %s86 = sphi 0, %s72
      %s92 = sphi 0, %s94
      %s95 = sphi 0, %s92
      %s96 = sphi 0, %s95
      %s112 = sphi 0, %s96
    $region4: #{conv_relu_block.1} parent=1 // loop_header_branch
      %17 = sbr.rel (%p15) target = $region8
    $region5: #{conv_relu_block.1} parent=1 // loop_body
      %s19 = ssub.s32 %s14, 1
      %s20 = ssub.s32 %s14, 2
      %s21 = sadd.s32 %s14, 1
      %s22 = ssub.s32 %s14, %s21
      %p23 = scmp.eq.s32.totalorder %s22, 0
      %s25 = sadd.s32 %s24, 1
      %s26 = scalar_select %p23, %s24, %s25
      %p29 = pneg %p23
      %p30 = scmp.eq.s32.totalorder %s14, 1
      %p31 = por %p29, %p30
      %p32 = scmp.ne.s32.totalorder %s24, %s27
      %p33 = scmp.eq.s32.totalorder %s14, 0
      %p34 = por %p32, %p33
      %p35 = scmp.ne.s32.totalorder %s24, %s27
      %p36 = scmp.eq.s32.totalorder %s19, 1
      %p37 = por %p35, %p36
      %p38 = scmp.ne.s32.totalorder %s27, %s28
      %p39 = scmp.eq.s32.totalorder %s19, 0
      %p40 = por %p38, %p39
      %p41 = scmp.ne.s32.totalorder %s27, %s28
      %p42 = scmp.eq.s32.totalorder %s20, 1
      %p43 = por %p41, %p42
      %p45 = scmp.ne.s32.totalorder %s28, %s44
      %p46 = scmp.eq.s32.totalorder %s20, 0
      %p47 = por %p45, %p46
      %s49 = sadd.s32 %s48, 1
      %p52 = scmp.eq.s32.totalorder %s14, 1
      %p53 = scmp.ne.s32.totalorder %s48, %s50
      %p54 = scmp.eq.s32.totalorder %s14, 0
      %p55 = por %p53, %p54
      %p56 = scmp.ne.s32.totalorder %s48, %s50
      %p57 = scmp.eq.s32.totalorder %s19, 1
      %p58 = por %p56, %p57
      %p59 = scmp.ne.s32.totalorder %s50, %s51
      %p60 = scmp.eq.s32.totalorder %s19, 0
      %p61 = por %p59, %p60
      %p62 = scmp.ne.s32.totalorder %s50, %s51
      %p63 = scmp.eq.s32.totalorder %s20, 1
      %p64 = por %p62, %p63
      %p66 = scmp.ne.s32.totalorder %s51, %s65
      %p67 = scmp.eq.s32.totalorder %s20, 0
      %p68 = por %p66, %p67
      %s70 = sadd.s32 %s69, 1
      %p73 = scmp.eq.s32.totalorder %s14, 1
      %p74 = scmp.ne.s32.totalorder %s69, %s71
      %p75 = scmp.eq.s32.totalorder %s14, 0
      %p76 = por %p74, %p75
      %p77 = scmp.ne.s32.totalorder %s69, %s71
      %p78 = scmp.eq.s32.totalorder %s19, 1
      %p79 = por %p77, %p78
      %p80 = scmp.ne.s32.totalorder %s71, %s72
      %p81 = scmp.eq.s32.totalorder %s19, 0
      %p82 = por %p80, %p81
      %p83 = scmp.ne.s32.totalorder %s71, %s72
      %p84 = scmp.eq.s32.totalorder %s20, 1
      %p85 = por %p83, %p84
      %p87 = scmp.ne.s32.totalorder %s72, %s86
      %p88 = scmp.eq.s32.totalorder %s20, 0
      %p89 = por %p87, %p88
      %s90 = ssub.s32 %s14, %s21
      %p91 = scmp.eq.s32.totalorder %s90, 0
      %s93 = sadd.s32 %s92, 1
      %s94 = scalar_select %p91, %s92, %s93
      %p97 = pneg %p91
      %p98 = scmp.eq.s32.totalorder %s14, 1
      %p99 = por %p97, %p98
      %p100 = scmp.ne.s32.totalorder %s92, %s95
      %p101 = scmp.eq.s32.totalorder %s14, 0
      %p102 = por %p100, %p101
      %p103 = scmp.ne.s32.totalorder %s92, %s95
      %p104 = scmp.eq.s32.totalorder %s19, 1
      %p105 = por %p103, %p104
      %p106 = scmp.ne.s32.totalorder %s95, %s96
      %p107 = scmp.eq.s32.totalorder %s19, 0
      %p108 = por %p106, %p107
      %p109 = scmp.ne.s32.totalorder %s95, %s96
      %p110 = scmp.eq.s32.totalorder %s20, 1
      %p111 = por %p109, %p110
      %p113 = scmp.ne.s32.totalorder %s96, %s112
      %p114 = scmp.eq.s32.totalorder %s20, 0
      %p115 = por %p113, %p114
      %p116 = scmp.le.s32.totalorder 1, %s14
      %p117 = scmp.lt.s32.totalorder %s14, 3
      %p118 = pnand %p116, %p117
      %p119 = pneg %p118
      // Predicated region
      $region9: #{conv_relu_block.1} parent=5 // pred_check
        _
      $region10: #{conv_relu_block.1} parent=5 // pred_check_branch
        %121 = sbr.rel (%p118) target = $region12
      $region11: #{conv_relu_block.1} parent=5 // pred_region
        %s122 = ssub.s32 %s14, 1
        // Predicated region
        $region13: #{conv_relu_block.1} parent=11 // pred_check
          %p123 = pneg %p61
        $region14: #{conv_relu_block.1} parent=11 // pred_check_branch
          %125 = sbr.rel (%p123) target = $region16
        $region15: #{conv_relu_block.1} parent=11 // pred_region
          %s127 = ssub.s32 32, 32
          %128 = vsyncadd [#allocation5], %s127
          %s130 = sshll.u32 %s1, 4
          %s131 = int_to_ptr.vmem [resolvable:$true] %s130
          %133 = dma.vmem_to_smem %s131, 32, [#allocation3], [#allocation5]
        $region16: #{conv_relu_block.1} parent=11 // pred_fallthru
          _
        // Predicated region
        $region17: #{conv_relu_block.1} parent=11 // pred_check
          %p134 = pneg %p82
        $region18: #{conv_relu_block.1} parent=11 // pred_check_branch
          %136 = sbr.rel (%p134) target = $region20
        $region19: #{conv_relu_block.1} parent=11 // pred_region
          %s138 = ssub.s32 16, 16
          %139 = vsyncadd [#allocation7], %s138
          %s141 = sshll.u32 %s2, 4
          %s142 = int_to_ptr.vmem [resolvable:$true] %s141
          %144 = dma.vmem_to_smem %s142, 16, [#allocation6], [#allocation7]
        $region20: #{conv_relu_block.1} parent=11 // pred_fallthru
          _
      $region12: #{conv_relu_block.1} parent=5 // pred_fallthru
        _
      %p145 = scmp.lt.s32.totalorder %s14, 2
      // Predicated region
      $region21: #{conv_relu_block.1} parent=5 // pred_check
        %p146 = pneg %p145
      $region22: #{conv_relu_block.1} parent=5 // pred_check_branch
        %148 = sbr.rel (%p146) target = $region24
      $region23: #{conv_relu_block.1} parent=5 // pred_region
        // Predicated region
        $region25: #{conv_relu_block.1} parent=23 // pred_check
          %p149 = pneg %p34
        $region26: #{conv_relu_block.1} parent=23 // pred_check_branch
          %151 = sbr.rel (%p149) target = $region28
        $region27: #{conv_relu_block.1} parent=23 // pred_region
          %p152 = scmp.lt.s32.totalorder %s14, 1
          %s153 = scalar_select %p152, %s14, 1
          %s154 = smul.addr %s153, 8
          %s155 = smul.addr %s154, 8
          %s156 = scalar_lea.vmem %s0, %s155
        $region28: #{conv_relu_block.1} parent=23 // pred_fallthru
          _
      $region24: #{conv_relu_block.1} parent=5 // pred_fallthru
        _
      %p157 = scmp.le.s32.totalorder 1, %s14
      %p158 = scmp.lt.s32.totalorder %s14, 3
      %p159 = pnand %p157, %p158
      %p160 = pneg %p159
      // Predicated region
      $region29: #{conv_relu_block.1} parent=5 // pred_check
        _
      $region30: #{conv_relu_block.1} parent=5 // pred_check_branch
        %162 = sbr.rel (%p159) target = $region32
      $region31: #{conv_relu_block.1} parent=5 // pred_region
        %s163 = ssub.s32 %s14, 1
        // Predicated region
        $region33: #{conv_relu_block.1} parent=31 // pred_check
          %p164 = pneg %p61
        $region34: #{conv_relu_block.1} parent=31 // pred_check_branch
          %166 = sbr.rel (%p164) target = $region36
        $region35: #{conv_relu_block.1} parent=31 // pred_region
          %167 = dma.done [#allocation5], 32
        $region36: #{conv_relu_block.1} parent=31 // pred_fallthru
          _
        // Predicated region
        $region37: #{conv_relu_block.1} parent=31 // pred_check
          %p168 = pneg %p82
        $region38: #{conv_relu_block.1} parent=31 // pred_check_branch
          %170 = sbr.rel (%p168) target = $region40
        $region39: #{conv_relu_block.1} parent=31 // pred_region
          %171 = dma.done [#allocation7], 16
        $region40: #{conv_relu_block.1} parent=31 // pred_fallthru
          _
        %172 = sfence
        %p173 = scmp.lt.s32.totalorder %s19, 1
        %s174 = scalar_select %p173, %s19, 1
        %s175 = smul.addr %s174, 8
        %s176 = smul.addr %s175, 8
        %s177 = scalar_lea.vmem %s0, %s176
        %p178 = pneg %p40
        %p179 = pneg %p37
        %p180 = pneg %p61
        %p181 = pneg %p58
        %p182 = pneg %p82
        %p183 = pneg %p79
        %p184 = pneg %p108
        %p185 = pneg %p105
        %s186 = sand.u32 %s95, 1
        %s187 = scalar_lea.sflag [#allocation4], %s186
        %s188 = sand.u32 %s95, 1
        %s189 = smul.addr %s188, 64
        %s190 = scalar_lea.vmem [#allocation8], %s189
        %p191 = scmp.lt.s32.totalorder %s19, 1
        %s192 = scalar_select %p191, %s19, 1
        %s193 = smul.addr %s192, 8
        %s194 = smul.addr %s193, 8
        %s195 = scalar_lea.vmem %s0, %s194
        %vm196 = vcmask 146432
        %197 = vst.msk [vmem:[#allocation2] sm:$0xff] %vm196, 0.0
        %198 = vst.msk [vmem:[#allocation2 + $0x8] sm:$0xff] %vm196, 0.0
        %vm199 = vcmask 140288
        %200 = vst.msk [vmem:[#allocation2 + $0x10] sm:$0x3] %vm199, 0.0
        %201 = vst.msk [vmem:[#allocation2 + $0x18] sm:$0xff] %vm196, 0.0
        %202 = vst.msk [vmem:[#allocation2 + $0x20] sm:$0xff] %vm196, 0.0
        %203 = vst.msk [vmem:[#allocation2 + $0x28] sm:$0x3] %vm199, 0.0
        %204 = vst.msk [vmem:[#allocation2 + $0x30] sm:$0xff] %vm196, 0.0
        %205 = vst.msk [vmem:[#allocation2 + $0x38] sm:$0xff] %vm196, 0.0
        %206 = vst.msk [vmem:[#allocation2 + $0x40] sm:$0x3] %vm199, 0.0
        %207 = vst.msk [vmem:[#allocation2 + $0x48] sm:$0xff] %vm196, 0.0
        %208 = vst.msk [vmem:[#allocation2 + $0x50] sm:$0xff] %vm196, 0.0
        %209 = vst.msk [vmem:[#allocation2 + $0x58] sm:$0x3] %vm199, 0.0
        %s210 = sld [smem:[#allocation6]]
        %v211 = vstv %s210
        %s212 = sld [smem:[#allocation6 + $0x1]]
        %v213 = vstv %s212
        %s214 = sld [smem:[#allocation6 + $0x2]]
        %v215 = vstv %s214
        %s216 = sld [smem:[#allocation6 + $0x3]]
        %v217 = vstv %s216
        %v218 = vld [vmem:[%s195] sm:$0xff]
        %v219 = vld [vmem:[%s195 + $0x8] sm:$0xff]
        %222 = vrot.lane.b32.xlu0 %v218, 1
        %v223 = vpop.permute.xlu0 %222
        %224 = vrot.lane.b32.xlu0 %v219, 1
        %v225 = vpop.permute.xlu0 %224
        %vm228 = vcmask 138248
        %229 = vst.msk [vmem:[#allocation2 + $0x1] sm:$0xff] %vm228, %v223
        %230 = vst.msk [vmem:[#allocation2 + $0x9] sm:$0xff] %vm228, %v225
        %s231 = scalar_lea.vmem %s195, 16
        %v232 = vld [vmem:[%s231] sm:$0xff]
        %v233 = vld [vmem:[%s231 + $0x8] sm:$0xff]
        %236 = vrot.lane.b32.xlu0 %v232, 1
        %v237 = vpop.permute.xlu0 %236
        %238 = vrot.lane.b32.xlu0 %v233, 1
        %v239 = vpop.permute.xlu0 %238
        %s242 = scalar_lea.vmem [#allocation2], 24
        %243 = vst.msk [vmem:[%s242 + $0x1] sm:$0xff] %vm228, %v237
        %244 = vst.msk [vmem:[%s242 + $0x9] sm:$0xff] %vm228, %v239
        %s245 = scalar_lea.vmem %s195, 32
        %v246 = vld [vmem:[%s245] sm:$0xff]
        %v247 = vld [vmem:[%s245 + $0x8] sm:$0xff]
        %250 = vrot.lane.b32.xlu0 %v246, 1
        %v251 = vpop.permute.xlu0 %250
        %252 = vrot.lane.b32.xlu0 %v247, 1
        %v253 = vpop.permute.xlu0 %252
        %s256 = scalar_lea.vmem [#allocation2], 48
        %257 = vst.msk [vmem:[%s256 + $0x1] sm:$0xff] %vm228, %v251
        %258 = vst.msk [vmem:[%s256 + $0x9] sm:$0xff] %vm228, %v253
        %s259 = scalar_lea.vmem %s195, 48
        %v260 = vld [vmem:[%s259] sm:$0xff]
        %v261 = vld [vmem:[%s259 + $0x8] sm:$0xff]
        %264 = vrot.lane.b32.xlu0 %v260, 1
        %v265 = vpop.permute.xlu0 %264
        %266 = vrot.lane.b32.xlu0 %v261, 1
        %v267 = vpop.permute.xlu0 %266
        %s270 = scalar_lea.vmem [#allocation2], 72
        %271 = vst.msk [vmem:[%s270 + $0x1] sm:$0xff] %vm228, %v265
        %272 = vst.msk [vmem:[%s270 + $0x9] sm:$0xff] %vm228, %v267
        %v273 = vld [vmem:[#allocation2] sm:$0xff]
        %v274 = vld [vmem:[#allocation2 + $0x8] sm:$0xff]
        %s275 = sld [smem:[#allocation3]]
        %v276 = vstv %s275
        %v277 = vmul.f32 %v276, %v273
        %v278 = vmul.f32 %v276, %v274
        %v279 = vadd.f32 %v211, %v277
        %v280 = vadd.f32 %v211, %v278
        %s281 = sld [smem:[#allocation3 + $0x24]]
        %v282 = vstv %s281
        %v283 = vmul.f32 %v282, %v273
        %v284 = vmul.f32 %v282, %v274
        %v285 = vadd.f32 %v213, %v283
        %v286 = vadd.f32 %v213, %v284
        %s287 = sld [smem:[#allocation3 + $0x48]]
        %v288 = vstv %s287
        %v289 = vmul.f32 %v288, %v273
        %v290 = vmul.f32 %v288, %v274
        %v291 = vadd.f32 %v215, %v289
        %v292 = vadd.f32 %v215, %v290
        %s293 = sld [smem:[#allocation3 + $0x6c]]
        %v294 = vstv %s293
        %v295 = vmul.f32 %v294, %v273
        %v296 = vmul.f32 %v294, %v274
        %v297 = vadd.f32 %v217, %v295
        %v298 = vadd.f32 %v217, %v296
        %s299 = sld [smem:[#allocation3 + $0x1]]
        %v300 = vstv %s299
        %v301 = vmul.f32 %v300, %v273
        %v302 = vmul.f32 %v300, %v274
        %305 = vrot.lane.b32.xlu0 %v301, 127
        %v306 = vpop.permute.xlu0 %305
        %307 = vrot.lane.b32.xlu0 %v302, 127
        %v308 = vpop.permute.xlu0 %307
        %v311 = vadd.f32 %v279, %v306
        %v312 = vadd.f32 %v280, %v308
        %s313 = sld [smem:[#allocation3 + $0x25]]
        %v314 = vstv %s313
        %v315 = vmul.f32 %v314, %v273
        %v316 = vmul.f32 %v314, %v274
        %319 = vrot.lane.b32.xlu0 %v315, 127
        %v320 = vpop.permute.xlu0 %319
        %321 = vrot.lane.b32.xlu0 %v316, 127
        %v322 = vpop.permute.xlu0 %321
        %v325 = vadd.f32 %v285, %v320
        %v326 = vadd.f32 %v286, %v322
        %s327 = sld [smem:[#allocation3 + $0x49]]
        %v328 = vstv %s327
        %v329 = vmul.f32 %v328, %v273
        %v330 = vmul.f32 %v328, %v274
        %333 = vrot.lane.b32.xlu0 %v329, 127
        %v334 = vpop.permute.xlu0 %333
        %335 = vrot.lane.b32.xlu0 %v330, 127
        %v336 = vpop.permute.xlu0 %335
        %v339 = vadd.f32 %v291, %v334
        %v340 = vadd.f32 %v292, %v336
        %s341 = sld [smem:[#allocation3 + $0x6d]]
        %v342 = vstv %s341
        %v343 = vmul.f32 %v342, %v273
        %v344 = vmul.f32 %v342, %v274
        %347 = vrot.lane.b32.xlu0 %v343, 127
        %v348 = vpop.permute.xlu0 %347
        %349 = vrot.lane.b32.xlu0 %v344, 127
        %v350 = vpop.permute.xlu0 %349
        %v353 = vadd.f32 %v297, %v348
        %v354 = vadd.f32 %v298, %v350
        %s355 = sld [smem:[#allocation3 + $0x2]]
        %v356 = vstv %s355
        %v357 = vmul.f32 %v356, %v273
        %v358 = vmul.f32 %v356, %v274
        %361 = vrot.lane.b32.xlu0 %v357, 126
        %v362 = vpop.permute.xlu0 %361
        %363 = vrot.lane.b32.xlu0 %v358, 126
        %v364 = vpop.permute.xlu0 %363
        %v367 = vadd.f32 %v311, %v362
        %v368 = vadd.f32 %v312, %v364
        %s369 = sld [smem:[#allocation3 + $0x26]]
        %v370 = vstv %s369
        %v371 = vmul.f32 %v370, %v273
        %v372 = vmul.f32 %v370, %v274
        %375 = vrot.lane.b32.xlu0 %v371, 126
        %v376 = vpop.permute.xlu0 %375
        %377 = vrot.lane.b32.xlu0 %v372, 126
        %v378 = vpop.permute.xlu0 %377
        %v381 = vadd.f32 %v325, %v376
        %v382 = vadd.f32 %v326, %v378
        %s383 = sld [smem:[#allocation3 + $0x4a]]
        %v384 = vstv %s383
        %v385 = vmul.f32 %v384, %v273
        %v386 = vmul.f32 %v384, %v274
        %389 = vrot.lane.b32.xlu0 %v385, 126
        %v390 = vpop.permute.xlu0 %389
        %391 = vrot.lane.b32.xlu0 %v386, 126
        %v392 = vpop.permute.xlu0 %391
        %v395 = vadd.f32 %v339, %v390
        %v396 = vadd.f32 %v340, %v392
        %s397 = sld [smem:[#allocation3 + $0x6e]]
        %v398 = vstv %s397
        %v399 = vmul.f32 %v398, %v273
        %v400 = vmul.f32 %v398, %v274
        %403 = vrot.lane.b32.xlu0 %v399, 126
        %v404 = vpop.permute.xlu0 %403
        %405 = vrot.lane.b32.xlu0 %v400, 126
        %v406 = vpop.permute.xlu0 %405
        %v409 = vadd.f32 %v353, %v404
        %v410 = vadd.f32 %v354, %v406
        %v411 = vld [vmem:[#allocation2 + $0x1] sm:$0xff]
        %v412 = vld [vmem:[#allocation2 + $0x9] sm:$0xff]
        %s413 = sld [smem:[#allocation3 + $0x3]]
        %v414 = vstv %s413
        %v415 = vmul.f32 %v414, %v411
        %v416 = vmul.f32 %v414, %v412
        %v417 = vadd.f32 %v367, %v415
        %v418 = vadd.f32 %v368, %v416
        %s419 = sld [smem:[#allocation3 + $0x27]]
        %v420 = vstv %s419
        %v421 = vmul.f32 %v420, %v411
        %v422 = vmul.f32 %v420, %v412
        %v423 = vadd.f32 %v381, %v421
        %v424 = vadd.f32 %v382, %v422
        %s425 = sld [smem:[#allocation3 + $0x4b]]
        %v426 = vstv %s425
        %v427 = vmul.f32 %v426, %v411
        %v428 = vmul.f32 %v426, %v412
        %v429 = vadd.f32 %v395, %v427
        %v430 = vadd.f32 %v396, %v428
        %s431 = sld [smem:[#allocation3 + $0x6f]]
        %v432 = vstv %s431
        %v433 = vmul.f32 %v432, %v411
        %v434 = vmul.f32 %v432, %v412
        %v435 = vadd.f32 %v409, %v433
        %v436 = vadd.f32 %v410, %v434
        %s437 = sld [smem:[#allocation3 + $0x4]]
        %v438 = vstv %s437
        %v439 = vmul.f32 %v438, %v411
        %v440 = vmul.f32 %v438, %v412
        %443 = vrot.lane.b32.xlu0 %v439, 127
        %v444 = vpop.permute.xlu0 %443
        %445 = vrot.lane.b32.xlu0 %v440, 127
        %v446 = vpop.permute.xlu0 %445
        %v449 = vadd.f32 %v417, %v444
        %v450 = vadd.f32 %v418, %v446
        %s451 = sld [smem:[#allocation3 + $0x28]]
        %v452 = vstv %s451
        %v453 = vmul.f32 %v452, %v411
        %v454 = vmul.f32 %v452, %v412
        %457 = vrot.lane.b32.xlu0 %v453, 127
        %v458 = vpop.permute.xlu0 %457
        %459 = vrot.lane.b32.xlu0 %v454, 127
        %v460 = vpop.permute.xlu0 %459
        %v463 = vadd.f32 %v423, %v458
        %v464 = vadd.f32 %v424, %v460
        %s465 = sld [smem:[#allocation3 + $0x4c]]
        %v466 = vstv %s465
        %v467 = vmul.f32 %v466, %v411
        %v468 = vmul.f32 %v466, %v412
        %471 = vrot.lane.b32.xlu0 %v467, 127
        %v472 = vpop.permute.xlu0 %471
        %473 = vrot.lane.b32.xlu0 %v468, 127
        %v474 = vpop.permute.xlu0 %473
        %v477 = vadd.f32 %v429, %v472
        %v478 = vadd.f32 %v430, %v474
        %s479 = sld [smem:[#allocation3 + $0x70]]
        %v480 = vstv %s479
        %v481 = vmul.f32 %v480, %v411
        %v482 = vmul.f32 %v480, %v412
        %485 = vrot.lane.b32.xlu0 %v481, 127
        %v486 = vpop.permute.xlu0 %485
        %487 = vrot.lane.b32.xlu0 %v482, 127
        %v488 = vpop.permute.xlu0 %487
        %v491 = vadd.f32 %v435, %v486
        %v492 = vadd.f32 %v436, %v488
        %s493 = sld [smem:[#allocation3 + $0x5]]
        %v494 = vstv %s493
        %v495 = vmul.f32 %v494, %v411
        %v496 = vmul.f32 %v494, %v412
        %499 = vrot.lane.b32.xlu0 %v495, 126
        %v500 = vpop.permute.xlu0 %499
        %501 = vrot.lane.b32.xlu0 %v496, 126
        %v502 = vpop.permute.xlu0 %501
        %v505 = vadd.f32 %v449, %v500
        %v506 = vadd.f32 %v450, %v502
        %s507 = sld [smem:[#allocation3 + $0x29]]
        %v508 = vstv %s507
        %v509 = vmul.f32 %v508, %v411
        %v510 = vmul.f32 %v508, %v412
        %513 = vrot.lane.b32.xlu0 %v509, 126
        %v514 = vpop.permute.xlu0 %513
        %515 = vrot.lane.b32.xlu0 %v510, 126
        %v516 = vpop.permute.xlu0 %515
        %v519 = vadd.f32 %v463, %v514
        %v520 = vadd.f32 %v464, %v516
        %s521 = sld [smem:[#allocation3 + $0x4d]]
        %v522 = vstv %s521
        %v523 = vmul.f32 %v522, %v411
        %v524 = vmul.f32 %v522, %v412
        %527 = vrot.lane.b32.xlu0 %v523, 126
        %v528 = vpop.permute.xlu0 %527
        %529 = vrot.lane.b32.xlu0 %v524, 126
        %v530 = vpop.permute.xlu0 %529
        %v533 = vadd.f32 %v477, %v528
        %v534 = vadd.f32 %v478, %v530
        %s535 = sld [smem:[#allocation3 + $0x71]]
        %v536 = vstv %s535
        %v537 = vmul.f32 %v536, %v411
        %v538 = vmul.f32 %v536, %v412
        %541 = vrot.lane.b32.xlu0 %v537, 126
        %v542 = vpop.permute.xlu0 %541
        %543 = vrot.lane.b32.xlu0 %v538, 126
        %v544 = vpop.permute.xlu0 %543
        %v547 = vadd.f32 %v491, %v542
        %v548 = vadd.f32 %v492, %v544
        %v549 = vld [vmem:[#allocation2 + $0x2] sm:$0xff]
        %v550 = vld [vmem:[#allocation2 + $0xa] sm:$0xff]
        %s551 = sld [smem:[#allocation3 + $0x6]]
        %v552 = vstv %s551
        %v553 = vmul.f32 %v552, %v549
        %v554 = vmul.f32 %v552, %v550
        %v555 = vadd.f32 %v505, %v553
        %v556 = vadd.f32 %v506, %v554
        %s557 = sld [smem:[#allocation3 + $0x2a]]
        %v558 = vstv %s557
        %v559 = vmul.f32 %v558, %v549
        %v560 = vmul.f32 %v558, %v550
        %v561 = vadd.f32 %v519, %v559
        %v562 = vadd.f32 %v520, %v560
        %s563 = sld [smem:[#allocation3 + $0x4e]]
        %v564 = vstv %s563
        %v565 = vmul.f32 %v564, %v549
        %v566 = vmul.f32 %v564, %v550
        %v567 = vadd.f32 %v533, %v565
        %v568 = vadd.f32 %v534, %v566
        %s569 = sld [smem:[#allocation3 + $0x72]]
        %v570 = vstv %s569
        %v571 = vmul.f32 %v570, %v549
        %v572 = vmul.f32 %v570, %v550
        %v573 = vadd.f32 %v547, %v571
        %v574 = vadd.f32 %v548, %v572
        %s575 = sld [smem:[#allocation3 + $0x7]]
        %v576 = vstv %s575
        %v577 = vmul.f32 %v576, %v549
        %v578 = vmul.f32 %v576, %v550
        %581 = vrot.lane.b32.xlu0 %v577, 127
        %v582 = vpop.permute.xlu0 %581
        %583 = vrot.lane.b32.xlu0 %v578, 127
        %v584 = vpop.permute.xlu0 %583
        %v587 = vadd.f32 %v555, %v582
        %v588 = vadd.f32 %v556, %v584
        %s589 = sld [smem:[#allocation3 + $0x2b]]
        %v590 = vstv %s589
        %v591 = vmul.f32 %v590, %v549
        %v592 = vmul.f32 %v590, %v550
        %595 = vrot.lane.b32.xlu0 %v591, 127
        %v596 = vpop.permute.xlu0 %595
        %597 = vrot.lane.b32.xlu0 %v592, 127
        %v598 = vpop.permute.xlu0 %597
        %v601 = vadd.f32 %v561, %v596
        %v602 = vadd.f32 %v562, %v598
        %s603 = sld [smem:[#allocation3 + $0x4f]]
        %v604 = vstv %s603
        %v605 = vmul.f32 %v604, %v549
        %v606 = vmul.f32 %v604, %v550
        %609 = vrot.lane.b32.xlu0 %v605, 127
        %v610 = vpop.permute.xlu0 %609
        %611 = vrot.lane.b32.xlu0 %v606, 127
        %v612 = vpop.permute.xlu0 %611
        %v615 = vadd.f32 %v567, %v610
        %v616 = vadd.f32 %v568, %v612
        %s617 = sld [smem:[#allocation3 + $0x73]]
        %v618 = vstv %s617
        %v619 = vmul.f32 %v618, %v549
        %v620 = vmul.f32 %v618, %v550
        %623 = vrot.lane.b32.xlu0 %v619, 127
        %v624 = vpop.permute.xlu0 %623
        %625 = vrot.lane.b32.xlu0 %v620, 127
        %v626 = vpop.permute.xlu0 %625
        %v629 = vadd.f32 %v573, %v624
        %v630 = vadd.f32 %v574, %v626
        %s631 = sld [smem:[#allocation3 + $0x8]]
        %v632 = vstv %s631
        %v633 = vmul.f32 %v632, %v549
        %v634 = vmul.f32 %v632, %v550
        %637 = vrot.lane.b32.xlu0 %v633, 126
        %v638 = vpop.permute.xlu0 %637
        %639 = vrot.lane.b32.xlu0 %v634, 126
        %v640 = vpop.permute.xlu0 %639
        %v643 = vadd.f32 %v587, %v638
        %v644 = vadd.f32 %v588, %v640
        %s645 = sld [smem:[#allocation3 + $0x2c]]
        %v646 = vstv %s645
        %v647 = vmul.f32 %v646, %v549
        %v648 = vmul.f32 %v646, %v550
        %651 = vrot.lane.b32.xlu0 %v647, 126
        %v652 = vpop.permute.xlu0 %651
        %653 = vrot.lane.b32.xlu0 %v648, 126
        %v654 = vpop.permute.xlu0 %653
        %v657 = vadd.f32 %v601, %v652
        %v658 = vadd.f32 %v602, %v654
        %s659 = sld [smem:[#allocation3 + $0x50]]
        %v660 = vstv %s659
        %v661 = vmul.f32 %v660, %v549
        %v662 = vmul.f32 %v660, %v550
        %665 = vrot.lane.b32.xlu0 %v661, 126
        %v666 = vpop.permute.xlu0 %665
        %667 = vrot.lane.b32.xlu0 %v662, 126
        %v668 = vpop.permute.xlu0 %667
        %v671 = vadd.f32 %v615, %v666
        %v672 = vadd.f32 %v616, %v668
        %s673 = sld [smem:[#allocation3 + $0x74]]
        %v674 = vstv %s673
        %v675 = vmul.f32 %v674, %v549
        %v676 = vmul.f32 %v674, %v550
        %679 = vrot.lane.b32.xlu0 %v675, 126
        %v680 = vpop.permute.xlu0 %679
        %681 = vrot.lane.b32.xlu0 %v676, 126
        %v682 = vpop.permute.xlu0 %681
        %v685 = vadd.f32 %v629, %v680
        %v686 = vadd.f32 %v630, %v682
        %v687 = vld [vmem:[%s242] sm:$0xff]
        %v688 = vld [vmem:[%s242 + $0x8] sm:$0xff]
        %s689 = sld [smem:[#allocation3 + $0x9]]
        %v690 = vstv %s689
        %v691 = vmul.f32 %v690, %v687
        %v692 = vmul.f32 %v690, %v688
        %v693 = vadd.f32 %v643, %v691
        %v694 = vadd.f32 %v644, %v692
        %s695 = sld [smem:[#allocation3 + $0x2d]]
        %v696 = vstv %s695
        %v697 = vmul.f32 %v696, %v687
        %v698 = vmul.f32 %v696, %v688
        %v699 = vadd.f32 %v657, %v697
        %v700 = vadd.f32 %v658, %v698
        %s701 = sld [smem:[#allocation3 + $0x51]]
        %v702 = vstv %s701
        %v703 = vmul.f32 %v702, %v687
        %v704 = vmul.f32 %v702, %v688
        %v705 = vadd.f32 %v671, %v703
        %v706 = vadd.f32 %v672, %v704
        %s707 = sld [smem:[#allocation3 + $0x75]]
        %v708 = vstv %s707
        %v709 = vmul.f32 %v708, %v687
        %v710 = vmul.f32 %v708, %v688
        %v711 = vadd.f32 %v685, %v709
        %v712 = vadd.f32 %v686, %v710
        %s713 = sld [smem:[#allocation3 + $0xa]]
        %v714 = vstv %s713
        %v715 = vmul.f32 %v714, %v687
        %v716 = vmul.f32 %v714, %v688
        %719 = vrot.lane.b32.xlu0 %v715, 127
        %v720 = vpop.permute.xlu0 %719
        %721 = vrot.lane.b32.xlu0 %v716, 127
        %v722 = vpop.permute.xlu0 %721
        %v725 = vadd.f32 %v693, %v720
        %v726 = vadd.f32 %v694, %v722
        %s727 = sld [smem:[#allocation3 + $0x2e]]
        %v728 = vstv %s727
        %v729 = vmul.f32 %v728, %v687
        %v730 = vmul.f32 %v728, %v688
        %733 = vrot.lane.b32.xlu0 %v729, 127
        %v734 = vpop.permute.xlu0 %733
        %735 = vrot.lane.b32.xlu0 %v730, 127
        %v736 = vpop.permute.xlu0 %735
        %v739 = vadd.f32 %v699, %v734
        %v740 = vadd.f32 %v700, %v736
        %s741 = sld [smem:[#allocation3 + $0x52]]
        %v742 = vstv %s741
        %v743 = vmul.f32 %v742, %v687
        %v744 = vmul.f32 %v742, %v688
        %747 = vrot.lane.b32.xlu0 %v743, 127
        %v748 = vpop.permute.xlu0 %747
        %749 = vrot.lane.b32.xlu0 %v744, 127
        %v750 = vpop.permute.xlu0 %749
        %v753 = vadd.f32 %v705, %v748
        %v754 = vadd.f32 %v706, %v750
        %s755 = sld [smem:[#allocation3 + $0x76]]
        %v756 = vstv %s755
        %v757 = vmul.f32 %v756, %v687
        %v758 = vmul.f32 %v756, %v688
        %761 = vrot.lane.b32.xlu0 %v757, 127
        %v762 = vpop.permute.xlu0 %761
        %763 = vrot.lane.b32.xlu0 %v758, 127
        %v764 = vpop.permute.xlu0 %763
        %v767 = vadd.f32 %v711, %v762
        %v768 = vadd.f32 %v712, %v764
        %s769 = sld [smem:[#allocation3 + $0xb]]
        %v770 = vstv %s769
        %v771 = vmul.f32 %v770, %v687
        %v772 = vmul.f32 %v770, %v688
        %775 = vrot.lane.b32.xlu0 %v771, 126
        %v776 = vpop.permute.xlu0 %775
        %777 = vrot.lane.b32.xlu0 %v772, 126
        %v778 = vpop.permute.xlu0 %777
        %v781 = vadd.f32 %v725, %v776
        %v782 = vadd.f32 %v726, %v778
        %s783 = sld [smem:[#allocation3 + $0x2f]]
        %v784 = vstv %s783
        %v785 = vmul.f32 %v784, %v687
        %v786 = vmul.f32 %v784, %v688
        %789 = vrot.lane.b32.xlu0 %v785, 126
        %v790 = vpop.permute.xlu0 %789
        %791 = vrot.lane.b32.xlu0 %v786, 126
        %v792 = vpop.permute.xlu0 %791
        %v795 = vadd.f32 %v739, %v790
        %v796 = vadd.f32 %v740, %v792
        %s797 = sld [smem:[#allocation3 + $0x53]]
        %v798 = vstv %s797
        %v799 = vmul.f32 %v798, %v687
        %v800 = vmul.f32 %v798, %v688
        %803 = vrot.lane.b32.xlu0 %v799, 126
        %v804 = vpop.permute.xlu0 %803
        %805 = vrot.lane.b32.xlu0 %v800, 126
        %v806 = vpop.permute.xlu0 %805
        %v809 = vadd.f32 %v753, %v804
        %v810 = vadd.f32 %v754, %v806
        %s811 = sld [smem:[#allocation3 + $0x77]]
        %v812 = vstv %s811
        %v813 = vmul.f32 %v812, %v687
        %v814 = vmul.f32 %v812, %v688
        %817 = vrot.lane.b32.xlu0 %v813, 126
        %v818 = vpop.permute.xlu0 %817
        %819 = vrot.lane.b32.xlu0 %v814, 126
        %v820 = vpop.permute.xlu0 %819
        %v823 = vadd.f32 %v767, %v818
        %v824 = vadd.f32 %v768, %v820
        %v825 = vld [vmem:[%s242 + $0x1] sm:$0xff]
        %v826 = vld [vmem:[%s242 + $0x9] sm:$0xff]
        %s827 = sld [smem:[#allocation3 + $0xc]]
        %v828 = vstv %s827
        %v829 = vmul.f32 %v828, %v825
        %v830 = vmul.f32 %v828, %v826
        %v831 = vadd.f32 %v781, %v829
        %v832 = vadd.f32 %v782, %v830
        %s833 = sld [smem:[#allocation3 + $0x30]]
        %v834 = vstv %s833
        %v835 = vmul.f32 %v834, %v825
        %v836 = vmul.f32 %v834, %v826
        %v837 = vadd.f32 %v795, %v835
        %v838 = vadd.f32 %v796, %v836
        %s839 = sld [smem:[#allocation3 + $0x54]]
        %v840 = vstv %s839
        %v841 = vmul.f32 %v840, %v825
        %v842 = vmul.f32 %v840, %v826
        %v843 = vadd.f32 %v809, %v841
        %v844 = vadd.f32 %v810, %v842
        %s845 = sld [smem:[#allocation3 + $0x78]]
        %v846 = vstv %s845
        %v847 = vmul.f32 %v846, %v825
        %v848 = vmul.f32 %v846, %v826
        %v849 = vadd.f32 %v823, %v847
        %v850 = vadd.f32 %v824, %v848
        %s851 = sld [smem:[#allocation3 + $0xd]]
        %v852 = vstv %s851
        %v853 = vmul.f32 %v852, %v825
        %v854 = vmul.f32 %v852, %v826
        %857 = vrot.lane.b32.xlu0 %v853, 127
        %v858 = vpop.permute.xlu0 %857
        %859 = vrot.lane.b32.xlu0 %v854, 127
        %v860 = vpop.permute.xlu0 %859
        %v863 = vadd.f32 %v831, %v858
        %v864 = vadd.f32 %v832, %v860
        %s865 = sld [smem:[#allocation3 + $0x31]]
        %v866 = vstv %s865
        %v867 = vmul.f32 %v866, %v825
        %v868 = vmul.f32 %v866, %v826
        %871 = vrot.lane.b32.xlu0 %v867, 127
        %v872 = vpop.permute.xlu0 %871
        %873 = vrot.lane.b32.xlu0 %v868, 127
        %v874 = vpop.permute.xlu0 %873
        %v877 = vadd.f32 %v837, %v872
        %v878 = vadd.f32 %v838, %v874
        %s879 = sld [smem:[#allocation3 + $0x55]]
        %v880 = vstv %s879
        %v881 = vmul.f32 %v880, %v825
        %v882 = vmul.f32 %v880, %v826
        %885 = vrot.lane.b32.xlu0 %v881, 127
        %v886 = vpop.permute.xlu0 %885
        %887 = vrot.lane.b32.xlu0 %v882, 127
        %v888 = vpop.permute.xlu0 %887
        %v891 = vadd.f32 %v843, %v886
        %v892 = vadd.f32 %v844, %v888
        %s893 = sld [smem:[#allocation3 + $0x79]]
        %v894 = vstv %s893
        %v895 = vmul.f32 %v894, %v825
        %v896 = vmul.f32 %v894, %v826
        %899 = vrot.lane.b32.xlu0 %v895, 127
        %v900 = vpop.permute.xlu0 %899
        %901 = vrot.lane.b32.xlu0 %v896, 127
        %v902 = vpop.permute.xlu0 %901
        %v905 = vadd.f32 %v849, %v900
        %v906 = vadd.f32 %v850, %v902
        %s907 = sld [smem:[#allocation3 + $0xe]]
        %v908 = vstv %s907
        %v909 = vmul.f32 %v908, %v825
        %v910 = vmul.f32 %v908, %v826
        %913 = vrot.lane.b32.xlu0 %v909, 126
        %v914 = vpop.permute.xlu0 %913
        %915 = vrot.lane.b32.xlu0 %v910, 126
        %v916 = vpop.permute.xlu0 %915
        %v919 = vadd.f32 %v863, %v914
        %v920 = vadd.f32 %v864, %v916
        %s921 = sld [smem:[#allocation3 + $0x32]]
        %v922 = vstv %s921
        %v923 = vmul.f32 %v922, %v825
        %v924 = vmul.f32 %v922, %v826
        %927 = vrot.lane.b32.xlu0 %v923, 126
        %v928 = vpop.permute.xlu0 %927
        %929 = vrot.lane.b32.xlu0 %v924, 126
        %v930 = vpop.permute.xlu0 %929
        %v933 = vadd.f32 %v877, %v928
        %v934 = vadd.f32 %v878, %v930
        %s935 = sld [smem:[#allocation3 + $0x56]]
        %v936 = vstv %s935
        %v937 = vmul.f32 %v936, %v825
        %v938 = vmul.f32 %v936, %v826
        %941 = vrot.lane.b32.xlu0 %v937, 126
        %v942 = vpop.permute.xlu0 %941
        %943 = vrot.lane.b32.xlu0 %v938, 126
        %v944 = vpop.permute.xlu0 %943
        %v947 = vadd.f32 %v891, %v942
        %v948 = vadd.f32 %v892, %v944
        %s949 = sld [smem:[#allocation3 + $0x7a]]
        %v950 = vstv %s949
        %v951 = vmul.f32 %v950, %v825
        %v952 = vmul.f32 %v950, %v826
        %955 = vrot.lane.b32.xlu0 %v951, 126
        %v956 = vpop.permute.xlu0 %955
        %957 = vrot.lane.b32.xlu0 %v952, 126
        %v958 = vpop.permute.xlu0 %957
        %v961 = vadd.f32 %v905, %v956
        %v962 = vadd.f32 %v906, %v958
        %v963 = vld [vmem:[%s242 + $0x2] sm:$0xff]
        %v964 = vld [vmem:[%s242 + $0xa] sm:$0xff]
        %s965 = sld [smem:[#allocation3 + $0xf]]
        %v966 = vstv %s965
        %v967 = vmul.f32 %v966, %v963
        %v968 = vmul.f32 %v966, %v964
        %v969 = vadd.f32 %v919, %v967
        %v970 = vadd.f32 %v920, %v968
        %s971 = sld [smem:[#allocation3 + $0x33]]
        %v972 = vstv %s971
        %v973 = vmul.f32 %v972, %v963
        %v974 = vmul.f32 %v972, %v964
        %v975 = vadd.f32 %v933, %v973
        %v976 = vadd.f32 %v934, %v974
        %s977 = sld [smem:[#allocation3 + $0x57]]
        %v978 = vstv %s977
        %v979 = vmul.f32 %v978, %v963
        %v980 = vmul.f32 %v978, %v964
        %v981 = vadd.f32 %v947, %v979
        %v982 = vadd.f32 %v948, %v980
        %s983 = sld [smem:[#allocation3 + $0x7b]]
        %v984 = vstv %s983
        %v985 = vmul.f32 %v984, %v963
        %v986 = vmul.f32 %v984, %v964
        %v987 = vadd.f32 %v961, %v985
        %v988 = vadd.f32 %v962, %v986
        %s989 = sld [smem:[#allocation3 + $0x10]]
        %v990 = vstv %s989
        %v991 = vmul.f32 %v990, %v963
        %v992 = vmul.f32 %v990, %v964
        %995 = vrot.lane.b32.xlu0 %v991, 127
        %v996 = vpop.permute.xlu0 %995
        %997 = vrot.lane.b32.xlu0 %v992, 127
        %v998 = vpop.permute.xlu0 %997
        %v1001 = vadd.f32 %v969, %v996
        %v1002 = vadd.f32 %v970, %v998
        %s1003 = sld [smem:[#allocation3 + $0x34]]
        %v1004 = vstv %s1003
        %v1005 = vmul.f32 %v1004, %v963
        %v1006 = vmul.f32 %v1004, %v964
        %1009 = vrot.lane.b32.xlu0 %v1005, 127
        %v1010 = vpop.permute.xlu0 %1009
        %1011 = vrot.lane.b32.xlu0 %v1006, 127
        %v1012 = vpop.permute.xlu0 %1011
        %v1015 = vadd.f32 %v975, %v1010
        %v1016 = vadd.f32 %v976, %v1012
        %s1017 = sld [smem:[#allocation3 + $0x58]]
        %v1018 = vstv %s1017
        %v1019 = vmul.f32 %v1018, %v963
        %v1020 = vmul.f32 %v1018, %v964
        %1023 = vrot.lane.b32.xlu0 %v1019, 127
        %v1024 = vpop.permute.xlu0 %1023
        %1025 = vrot.lane.b32.xlu0 %v1020, 127
        %v1026 = vpop.permute.xlu0 %1025
        %v1029 = vadd.f32 %v981, %v1024
        %v1030 = vadd.f32 %v982, %v1026
        %s1031 = sld [smem:[#allocation3 + $0x7c]]
        %v1032 = vstv %s1031
        %v1033 = vmul.f32 %v1032, %v963
        %v1034 = vmul.f32 %v1032, %v964
        %1037 = vrot.lane.b32.xlu0 %v1033, 127
        %v1038 = vpop.permute.xlu0 %1037
        %1039 = vrot.lane.b32.xlu0 %v1034, 127
        %v1040 = vpop.permute.xlu0 %1039
        %v1043 = vadd.f32 %v987, %v1038
        %v1044 = vadd.f32 %v988, %v1040
        %s1045 = sld [smem:[#allocation3 + $0x11]]
        %v1046 = vstv %s1045
        %v1047 = vmul.f32 %v1046, %v963
        %v1048 = vmul.f32 %v1046, %v964
        %1051 = vrot.lane.b32.xlu0 %v1047, 126
        %v1052 = vpop.permute.xlu0 %1051
        %1053 = vrot.lane.b32.xlu0 %v1048, 126
        %v1054 = vpop.permute.xlu0 %1053
        %v1057 = vadd.f32 %v1001, %v1052
        %v1058 = vadd.f32 %v1002, %v1054
        %s1059 = sld [smem:[#allocation3 + $0x35]]
        %v1060 = vstv %s1059
        %v1061 = vmul.f32 %v1060, %v963
        %v1062 = vmul.f32 %v1060, %v964
        %1065 = vrot.lane.b32.xlu0 %v1061, 126
        %v1066 = vpop.permute.xlu0 %1065
        %1067 = vrot.lane.b32.xlu0 %v1062, 126
        %v1068 = vpop.permute.xlu0 %1067
        %v1071 = vadd.f32 %v1015, %v1066
        %v1072 = vadd.f32 %v1016, %v1068
        %s1073 = sld [smem:[#allocation3 + $0x59]]
        %v1074 = vstv %s1073
        %v1075 = vmul.f32 %v1074, %v963
        %v1076 = vmul.f32 %v1074, %v964
        %1079 = vrot.lane.b32.xlu0 %v1075, 126
        %v1080 = vpop.permute.xlu0 %1079
        %1081 = vrot.lane.b32.xlu0 %v1076, 126
        %v1082 = vpop.permute.xlu0 %1081
        %v1085 = vadd.f32 %v1029, %v1080
        %v1086 = vadd.f32 %v1030, %v1082
        %s1087 = sld [smem:[#allocation3 + $0x7d]]
        %v1088 = vstv %s1087
        %v1089 = vmul.f32 %v1088, %v963
        %v1090 = vmul.f32 %v1088, %v964
        %1093 = vrot.lane.b32.xlu0 %v1089, 126
        %v1094 = vpop.permute.xlu0 %1093
        %1095 = vrot.lane.b32.xlu0 %v1090, 126
        %v1096 = vpop.permute.xlu0 %1095
        %v1099 = vadd.f32 %v1043, %v1094
        %v1100 = vadd.f32 %v1044, %v1096
        %v1101 = vld [vmem:[%s256] sm:$0xff]
        %v1102 = vld [vmem:[%s256 + $0x8] sm:$0xff]
        %s1103 = sld [smem:[#allocation3 + $0x12]]
        %v1104 = vstv %s1103
        %v1105 = vmul.f32 %v1104, %v1101
        %v1106 = vmul.f32 %v1104, %v1102
        %v1107 = vadd.f32 %v1057, %v1105
        %v1108 = vadd.f32 %v1058, %v1106
        %s1109 = sld [smem:[#allocation3 + $0x36]]
        %v1110 = vstv %s1109
        %v1111 = vmul.f32 %v1110, %v1101
        %v1112 = vmul.f32 %v1110, %v1102
        %v1113 = vadd.f32 %v1071, %v1111
        %v1114 = vadd.f32 %v1072, %v1112
        %s1115 = sld [smem:[#allocation3 + $0x5a]]
        %v1116 = vstv %s1115
        %v1117 = vmul.f32 %v1116, %v1101
        %v1118 = vmul.f32 %v1116, %v1102
        %v1119 = vadd.f32 %v1085, %v1117
        %v1120 = vadd.f32 %v1086, %v1118
        %s1121 = sld [smem:[#allocation3 + $0x7e]]
        %v1122 = vstv %s1121
        %v1123 = vmul.f32 %v1122, %v1101
        %v1124 = vmul.f32 %v1122, %v1102
        %v1125 = vadd.f32 %v1099, %v1123
        %v1126 = vadd.f32 %v1100, %v1124
        %s1127 = sld [smem:[#allocation3 + $0x13]]
        %v1128 = vstv %s1127
        %v1129 = vmul.f32 %v1128, %v1101
        %v1130 = vmul.f32 %v1128, %v1102
        %1133 = vrot.lane.b32.xlu0 %v1129, 127
        %v1134 = vpop.permute.xlu0 %1133
        %1135 = vrot.lane.b32.xlu0 %v1130, 127
        %v1136 = vpop.permute.xlu0 %1135
        %v1139 = vadd.f32 %v1107, %v1134
        %v1140 = vadd.f32 %v1108, %v1136
        %s1141 = sld [smem:[#allocation3 + $0x37]]
        %v1142 = vstv %s1141
        %v1143 = vmul.f32 %v1142, %v1101
        %v1144 = vmul.f32 %v1142, %v1102
        %1147 = vrot.lane.b32.xlu0 %v1143, 127
        %v1148 = vpop.permute.xlu0 %1147
        %1149 = vrot.lane.b32.xlu0 %v1144, 127
        %v1150 = vpop.permute.xlu0 %1149
        %v1153 = vadd.f32 %v1113, %v1148
        %v1154 = vadd.f32 %v1114, %v1150
        %s1155 = sld [smem:[#allocation3 + $0x5b]]
        %v1156 = vstv %s1155
        %v1157 = vmul.f32 %v1156, %v1101
        %v1158 = vmul.f32 %v1156, %v1102
        %1161 = vrot.lane.b32.xlu0 %v1157, 127
        %v1162 = vpop.permute.xlu0 %1161
        %1163 = vrot.lane.b32.xlu0 %v1158, 127
        %v1164 = vpop.permute.xlu0 %1163
        %v1167 = vadd.f32 %v1119, %v1162
        %v1168 = vadd.f32 %v1120, %v1164
        %s1169 = sld [smem:[#allocation3 + $0x7f]]
        %v1170 = vstv %s1169
        %v1171 = vmul.f32 %v1170, %v1101
        %v1172 = vmul.f32 %v1170, %v1102
        %1175 = vrot.lane.b32.xlu0 %v1171, 127
        %v1176 = vpop.permute.xlu0 %1175
        %1177 = vrot.lane.b32.xlu0 %v1172, 127
        %v1178 = vpop.permute.xlu0 %1177
        %v1181 = vadd.f32 %v1125, %v1176
        %v1182 = vadd.f32 %v1126, %v1178
        %s1183 = sld [smem:[#allocation3 + $0x14]]
        %v1184 = vstv %s1183
        %v1185 = vmul.f32 %v1184, %v1101
        %v1186 = vmul.f32 %v1184, %v1102
        %1189 = vrot.lane.b32.xlu0 %v1185, 126
        %v1190 = vpop.permute.xlu0 %1189
        %1191 = vrot.lane.b32.xlu0 %v1186, 126
        %v1192 = vpop.permute.xlu0 %1191
        %v1195 = vadd.f32 %v1139, %v1190
        %v1196 = vadd.f32 %v1140, %v1192
        %s1197 = sld [smem:[#allocation3 + $0x38]]
        %v1198 = vstv %s1197
        %v1199 = vmul.f32 %v1198, %v1101
        %v1200 = vmul.f32 %v1198, %v1102
        %1203 = vrot.lane.b32.xlu0 %v1199, 126
        %v1204 = vpop.permute.xlu0 %1203
        %1205 = vrot.lane.b32.xlu0 %v1200, 126
        %v1206 = vpop.permute.xlu0 %1205
        %v1209 = vadd.f32 %v1153, %v1204
        %v1210 = vadd.f32 %v1154, %v1206
        %s1211 = sld [smem:[#allocation3 + $0x5c]]
        %v1212 = vstv %s1211
        %v1213 = vmul.f32 %v1212, %v1101
        %v1214 = vmul.f32 %v1212, %v1102
        %1217 = vrot.lane.b32.xlu0 %v1213, 126
        %v1218 = vpop.permute.xlu0 %1217
        %1219 = vrot.lane.b32.xlu0 %v1214, 126
        %v1220 = vpop.permute.xlu0 %1219
        %v1223 = vadd.f32 %v1167, %v1218
        %v1224 = vadd.f32 %v1168, %v1220
        %s1225 = sld [smem:[#allocation3 + $0x80]]
        %v1226 = vstv %s1225
        %v1227 = vmul.f32 %v1226, %v1101
        %v1228 = vmul.f32 %v1226, %v1102
        %1231 = vrot.lane.b32.xlu0 %v1227, 126
        %v1232 = vpop.permute.xlu0 %1231
        %1233 = vrot.lane.b32.xlu0 %v1228, 126
        %v1234 = vpop.permute.xlu0 %1233
        %v1237 = vadd.f32 %v1181, %v1232
        %v1238 = vadd.f32 %v1182, %v1234
        %v1239 = vld [vmem:[%s256 + $0x1] sm:$0xff]
        %v1240 = vld [vmem:[%s256 + $0x9] sm:$0xff]
        %s1241 = sld [smem:[#allocation3 + $0x15]]
        %v1242 = vstv %s1241
        %v1243 = vmul.f32 %v1242, %v1239
        %v1244 = vmul.f32 %v1242, %v1240
        %v1245 = vadd.f32 %v1195, %v1243
        %v1246 = vadd.f32 %v1196, %v1244
        %s1247 = sld [smem:[#allocation3 + $0x39]]
        %v1248 = vstv %s1247
        %v1249 = vmul.f32 %v1248, %v1239
        %v1250 = vmul.f32 %v1248, %v1240
        %v1251 = vadd.f32 %v1209, %v1249
        %v1252 = vadd.f32 %v1210, %v1250
        %s1253 = sld [smem:[#allocation3 + $0x5d]]
        %v1254 = vstv %s1253
        %v1255 = vmul.f32 %v1254, %v1239
        %v1256 = vmul.f32 %v1254, %v1240
        %v1257 = vadd.f32 %v1223, %v1255
        %v1258 = vadd.f32 %v1224, %v1256
        %s1259 = sld [smem:[#allocation3 + $0x81]]
        %v1260 = vstv %s1259
        %v1261 = vmul.f32 %v1260, %v1239
        %v1262 = vmul.f32 %v1260, %v1240
        %v1263 = vadd.f32 %v1237, %v1261
        %v1264 = vadd.f32 %v1238, %v1262
        %s1265 = sld [smem:[#allocation3 + $0x16]]
        %v1266 = vstv %s1265
        %v1267 = vmul.f32 %v1266, %v1239
        %v1268 = vmul.f32 %v1266, %v1240
        %1271 = vrot.lane.b32.xlu0 %v1267, 127
        %v1272 = vpop.permute.xlu0 %1271
        %1273 = vrot.lane.b32.xlu0 %v1268, 127
        %v1274 = vpop.permute.xlu0 %1273
        %v1277 = vadd.f32 %v1245, %v1272
        %v1278 = vadd.f32 %v1246, %v1274
        %s1279 = sld [smem:[#allocation3 + $0x3a]]
        %v1280 = vstv %s1279
        %v1281 = vmul.f32 %v1280, %v1239
        %v1282 = vmul.f32 %v1280, %v1240
        %1285 = vrot.lane.b32.xlu0 %v1281, 127
        %v1286 = vpop.permute.xlu0 %1285
        %1287 = vrot.lane.b32.xlu0 %v1282, 127
        %v1288 = vpop.permute.xlu0 %1287
        %v1291 = vadd.f32 %v1251, %v1286
        %v1292 = vadd.f32 %v1252, %v1288
        %s1293 = sld [smem:[#allocation3 + $0x5e]]
        %v1294 = vstv %s1293
        %v1295 = vmul.f32 %v1294, %v1239
        %v1296 = vmul.f32 %v1294, %v1240
        %1299 = vrot.lane.b32.xlu0 %v1295, 127
        %v1300 = vpop.permute.xlu0 %1299
        %1301 = vrot.lane.b32.xlu0 %v1296, 127
        %v1302 = vpop.permute.xlu0 %1301
        %v1305 = vadd.f32 %v1257, %v1300
        %v1306 = vadd.f32 %v1258, %v1302
        %s1307 = sld [smem:[#allocation3 + $0x82]]
        %v1308 = vstv %s1307
        %v1309 = vmul.f32 %v1308, %v1239
        %v1310 = vmul.f32 %v1308, %v1240
        %1313 = vrot.lane.b32.xlu0 %v1309, 127
        %v1314 = vpop.permute.xlu0 %1313
        %1315 = vrot.lane.b32.xlu0 %v1310, 127
        %v1316 = vpop.permute.xlu0 %1315
        %v1319 = vadd.f32 %v1263, %v1314
        %v1320 = vadd.f32 %v1264, %v1316
        %s1321 = sld [smem:[#allocation3 + $0x17]]
        %v1322 = vstv %s1321
        %v1323 = vmul.f32 %v1322, %v1239
        %v1324 = vmul.f32 %v1322, %v1240
        %1327 = vrot.lane.b32.xlu0 %v1323, 126
        %v1328 = vpop.permute.xlu0 %1327
        %1329 = vrot.lane.b32.xlu0 %v1324, 126
        %v1330 = vpop.permute.xlu0 %1329
        %v1333 = vadd.f32 %v1277, %v1328
        %v1334 = vadd.f32 %v1278, %v1330
        %s1335 = sld [smem:[#allocation3 + $0x3b]]
        %v1336 = vstv %s1335
        %v1337 = vmul.f32 %v1336, %v1239
        %v1338 = vmul.f32 %v1336, %v1240
        %1341 = vrot.lane.b32.xlu0 %v1337, 126
        %v1342 = vpop.permute.xlu0 %1341
        %1343 = vrot.lane.b32.xlu0 %v1338, 126
        %v1344 = vpop.permute.xlu0 %1343
        %v1347 = vadd.f32 %v1291, %v1342
        %v1348 = vadd.f32 %v1292, %v1344
        %s1349 = sld [smem:[#allocation3 + $0x5f]]
        %v1350 = vstv %s1349
        %v1351 = vmul.f32 %v1350, %v1239
        %v1352 = vmul.f32 %v1350, %v1240
        %1355 = vrot.lane.b32.xlu0 %v1351, 126
        %v1356 = vpop.permute.xlu0 %1355
        %1357 = vrot.lane.b32.xlu0 %v1352, 126
        %v1358 = vpop.permute.xlu0 %1357
        %v1361 = vadd.f32 %v1305, %v1356
        %v1362 = vadd.f32 %v1306, %v1358
        %s1363 = sld [smem:[#allocation3 + $0x83]]
        %v1364 = vstv %s1363
        %v1365 = vmul.f32 %v1364, %v1239
        %v1366 = vmul.f32 %v1364, %v1240
        %1369 = vrot.lane.b32.xlu0 %v1365, 126
        %v1370 = vpop.permute.xlu0 %1369
        %1371 = vrot.lane.b32.xlu0 %v1366, 126
        %v1372 = vpop.permute.xlu0 %1371
        %v1375 = vadd.f32 %v1319, %v1370
        %v1376 = vadd.f32 %v1320, %v1372
        %v1377 = vld [vmem:[%s256 + $0x2] sm:$0xff]
        %v1378 = vld [vmem:[%s256 + $0xa] sm:$0xff]
        %s1379 = sld [smem:[#allocation3 + $0x18]]
        %v1380 = vstv %s1379
        %v1381 = vmul.f32 %v1380, %v1377
        %v1382 = vmul.f32 %v1380, %v1378
        %v1383 = vadd.f32 %v1333, %v1381
        %v1384 = vadd.f32 %v1334, %v1382
        %s1385 = sld [smem:[#allocation3 + $0x3c]]
        %v1386 = vstv %s1385
        %v1387 = vmul.f32 %v1386, %v1377
        %v1388 = vmul.f32 %v1386, %v1378
        %v1389 = vadd.f32 %v1347, %v1387
        %v1390 = vadd.f32 %v1348, %v1388
        %s1391 = sld [smem:[#allocation3 + $0x60]]
        %v1392 = vstv %s1391
        %v1393 = vmul.f32 %v1392, %v1377
        %v1394 = vmul.f32 %v1392, %v1378
        %v1395 = vadd.f32 %v1361, %v1393
        %v1396 = vadd.f32 %v1362, %v1394
        %s1397 = sld [smem:[#allocation3 + $0x84]]
        %v1398 = vstv %s1397
        %v1399 = vmul.f32 %v1398, %v1377
        %v1400 = vmul.f32 %v1398, %v1378
        %v1401 = vadd.f32 %v1375, %v1399
        %v1402 = vadd.f32 %v1376, %v1400
        %s1403 = sld [smem:[#allocation3 + $0x19]]
        %v1404 = vstv %s1403
        %v1405 = vmul.f32 %v1404, %v1377
        %v1406 = vmul.f32 %v1404, %v1378
        %1409 = vrot.lane.b32.xlu0 %v1405, 127
        %v1410 = vpop.permute.xlu0 %1409
        %1411 = vrot.lane.b32.xlu0 %v1406, 127
        %v1412 = vpop.permute.xlu0 %1411
        %v1415 = vadd.f32 %v1383, %v1410
        %v1416 = vadd.f32 %v1384, %v1412
        %s1417 = sld [smem:[#allocation3 + $0x3d]]
        %v1418 = vstv %s1417
        %v1419 = vmul.f32 %v1418, %v1377
        %v1420 = vmul.f32 %v1418, %v1378
        %1423 = vrot.lane.b32.xlu0 %v1419, 127
        %v1424 = vpop.permute.xlu0 %1423
        %1425 = vrot.lane.b32.xlu0 %v1420, 127
        %v1426 = vpop.permute.xlu0 %1425
        %v1429 = vadd.f32 %v1389, %v1424
        %v1430 = vadd.f32 %v1390, %v1426
        %s1431 = sld [smem:[#allocation3 + $0x61]]
        %v1432 = vstv %s1431
        %v1433 = vmul.f32 %v1432, %v1377
        %v1434 = vmul.f32 %v1432, %v1378
        %1437 = vrot.lane.b32.xlu0 %v1433, 127
        %v1438 = vpop.permute.xlu0 %1437
        %1439 = vrot.lane.b32.xlu0 %v1434, 127
        %v1440 = vpop.permute.xlu0 %1439
        %v1443 = vadd.f32 %v1395, %v1438
        %v1444 = vadd.f32 %v1396, %v1440
        %s1445 = sld [smem:[#allocation3 + $0x85]]
        %v1446 = vstv %s1445
        %v1447 = vmul.f32 %v1446, %v1377
        %v1448 = vmul.f32 %v1446, %v1378
        %1451 = vrot.lane.b32.xlu0 %v1447, 127
        %v1452 = vpop.permute.xlu0 %1451
        %1453 = vrot.lane.b32.xlu0 %v1448, 127
        %v1454 = vpop.permute.xlu0 %1453
        %v1457 = vadd.f32 %v1401, %v1452
        %v1458 = vadd.f32 %v1402, %v1454
        %s1459 = sld [smem:[#allocation3 + $0x1a]]
        %v1460 = vstv %s1459
        %v1461 = vmul.f32 %v1460, %v1377
        %v1462 = vmul.f32 %v1460, %v1378
        %1465 = vrot.lane.b32.xlu0 %v1461, 126
        %v1466 = vpop.permute.xlu0 %1465
        %1467 = vrot.lane.b32.xlu0 %v1462, 126
        %v1468 = vpop.permute.xlu0 %1467
        %v1471 = vadd.f32 %v1415, %v1466
        %v1472 = vadd.f32 %v1416, %v1468
        %s1473 = sld [smem:[#allocation3 + $0x3e]]
        %v1474 = vstv %s1473
        %v1475 = vmul.f32 %v1474, %v1377
        %v1476 = vmul.f32 %v1474, %v1378
        %1479 = vrot.lane.b32.xlu0 %v1475, 126
        %v1480 = vpop.permute.xlu0 %1479
        %1481 = vrot.lane.b32.xlu0 %v1476, 126
        %v1482 = vpop.permute.xlu0 %1481
        %v1485 = vadd.f32 %v1429, %v1480
        %v1486 = vadd.f32 %v1430, %v1482
        %s1487 = sld [smem:[#allocation3 + $0x62]]
        %v1488 = vstv %s1487
        %v1489 = vmul.f32 %v1488, %v1377
        %v1490 = vmul.f32 %v1488, %v1378
        %1493 = vrot.lane.b32.xlu0 %v1489, 126
        %v1494 = vpop.permute.xlu0 %1493
        %1495 = vrot.lane.b32.xlu0 %v1490, 126
        %v1496 = vpop.permute.xlu0 %1495
        %v1499 = vadd.f32 %v1443, %v1494
        %v1500 = vadd.f32 %v1444, %v1496
        %s1501 = sld [smem:[#allocation3 + $0x86]]
        %v1502 = vstv %s1501
        %v1503 = vmul.f32 %v1502, %v1377
        %v1504 = vmul.f32 %v1502, %v1378
        %1507 = vrot.lane.b32.xlu0 %v1503, 126
        %v1508 = vpop.permute.xlu0 %1507
        %1509 = vrot.lane.b32.xlu0 %v1504, 126
        %v1510 = vpop.permute.xlu0 %1509
        %v1513 = vadd.f32 %v1457, %v1508
        %v1514 = vadd.f32 %v1458, %v1510
        %v1515 = vld [vmem:[%s270] sm:$0xff]
        %v1516 = vld [vmem:[%s270 + $0x8] sm:$0xff]
        %s1517 = sld [smem:[#allocation3 + $0x1b]]
        %v1518 = vstv %s1517
        %v1519 = vmul.f32 %v1518, %v1515
        %v1520 = vmul.f32 %v1518, %v1516
        %v1521 = vadd.f32 %v1471, %v1519
        %v1522 = vadd.f32 %v1472, %v1520
        %s1523 = sld [smem:[#allocation3 + $0x3f]]
        %v1524 = vstv %s1523
        %v1525 = vmul.f32 %v1524, %v1515
        %v1526 = vmul.f32 %v1524, %v1516
        %v1527 = vadd.f32 %v1485, %v1525
        %v1528 = vadd.f32 %v1486, %v1526
        %s1529 = sld [smem:[#allocation3 + $0x63]]
        %v1530 = vstv %s1529
        %v1531 = vmul.f32 %v1530, %v1515
        %v1532 = vmul.f32 %v1530, %v1516
        %v1533 = vadd.f32 %v1499, %v1531
        %v1534 = vadd.f32 %v1500, %v1532
        %s1535 = sld [smem:[#allocation3 + $0x87]]
        %v1536 = vstv %s1535
        %v1537 = vmul.f32 %v1536, %v1515
        %v1538 = vmul.f32 %v1536, %v1516
        %v1539 = vadd.f32 %v1513, %v1537
        %v1540 = vadd.f32 %v1514, %v1538
        %s1541 = sld [smem:[#allocation3 + $0x1c]]
        %v1542 = vstv %s1541
        %v1543 = vmul.f32 %v1542, %v1515
        %v1544 = vmul.f32 %v1542, %v1516
        %1547 = vrot.lane.b32.xlu0 %v1543, 127
        %v1548 = vpop.permute.xlu0 %1547
        %1549 = vrot.lane.b32.xlu0 %v1544, 127
        %v1550 = vpop.permute.xlu0 %1549
        %v1553 = vadd.f32 %v1521, %v1548
        %v1554 = vadd.f32 %v1522, %v1550
        %s1555 = sld [smem:[#allocation3 + $0x40]]
        %v1556 = vstv %s1555
        %v1557 = vmul.f32 %v1556, %v1515
        %v1558 = vmul.f32 %v1556, %v1516
        %1561 = vrot.lane.b32.xlu0 %v1557, 127
        %v1562 = vpop.permute.xlu0 %1561
        %1563 = vrot.lane.b32.xlu0 %v1558, 127
        %v1564 = vpop.permute.xlu0 %1563
        %v1567 = vadd.f32 %v1527, %v1562
        %v1568 = vadd.f32 %v1528, %v1564
        %s1569 = sld [smem:[#allocation3 + $0x64]]
        %v1570 = vstv %s1569
        %v1571 = vmul.f32 %v1570, %v1515
        %v1572 = vmul.f32 %v1570, %v1516
        %1575 = vrot.lane.b32.xlu0 %v1571, 127
        %v1576 = vpop.permute.xlu0 %1575
        %1577 = vrot.lane.b32.xlu0 %v1572, 127
        %v1578 = vpop.permute.xlu0 %1577
        %v1581 = vadd.f32 %v1533, %v1576
        %v1582 = vadd.f32 %v1534, %v1578
        %s1583 = sld [smem:[#allocation3 + $0x88]]
        %v1584 = vstv %s1583
        %v1585 = vmul.f32 %v1584, %v1515
        %v1586 = vmul.f32 %v1584, %v1516
        %1589 = vrot.lane.b32.xlu0 %v1585, 127
        %v1590 = vpop.permute.xlu0 %1589
        %1591 = vrot.lane.b32.xlu0 %v1586, 127
        %v1592 = vpop.permute.xlu0 %1591
        %v1595 = vadd.f32 %v1539, %v1590
        %v1596 = vadd.f32 %v1540, %v1592
        %s1597 = sld [smem:[#allocation3 + $0x1d]]
        %v1598 = vstv %s1597
        %v1599 = vmul.f32 %v1598, %v1515
        %v1600 = vmul.f32 %v1598, %v1516
        %1603 = vrot.lane.b32.xlu0 %v1599, 126
        %v1604 = vpop.permute.xlu0 %1603
        %1605 = vrot.lane.b32.xlu0 %v1600, 126
        %v1606 = vpop.permute.xlu0 %1605
        %v1609 = vadd.f32 %v1553, %v1604
        %v1610 = vadd.f32 %v1554, %v1606
        %s1611 = sld [smem:[#allocation3 + $0x41]]
        %v1612 = vstv %s1611
        %v1613 = vmul.f32 %v1612, %v1515
        %v1614 = vmul.f32 %v1612, %v1516
        %1617 = vrot.lane.b32.xlu0 %v1613, 126
        %v1618 = vpop.permute.xlu0 %1617
        %1619 = vrot.lane.b32.xlu0 %v1614, 126
        %v1620 = vpop.permute.xlu0 %1619
        %v1623 = vadd.f32 %v1567, %v1618
        %v1624 = vadd.f32 %v1568, %v1620
        %s1625 = sld [smem:[#allocation3 + $0x65]]
        %v1626 = vstv %s1625
        %v1627 = vmul.f32 %v1626, %v1515
        %v1628 = vmul.f32 %v1626, %v1516
        %1631 = vrot.lane.b32.xlu0 %v1627, 126
        %v1632 = vpop.permute.xlu0 %1631
        %1633 = vrot.lane.b32.xlu0 %v1628, 126
        %v1634 = vpop.permute.xlu0 %1633
        %v1637 = vadd.f32 %v1581, %v1632
        %v1638 = vadd.f32 %v1582, %v1634
        %s1639 = sld [smem:[#allocation3 + $0x89]]
        %v1640 = vstv %s1639
        %v1641 = vmul.f32 %v1640, %v1515
        %v1642 = vmul.f32 %v1640, %v1516
        %1645 = vrot.lane.b32.xlu0 %v1641, 126
        %v1646 = vpop.permute.xlu0 %1645
        %1647 = vrot.lane.b32.xlu0 %v1642, 126
        %v1648 = vpop.permute.xlu0 %1647
        %v1651 = vadd.f32 %v1595, %v1646
        %v1652 = vadd.f32 %v1596, %v1648
        %v1653 = vld [vmem:[%s270 + $0x1] sm:$0xff]
        %v1654 = vld [vmem:[%s270 + $0x9] sm:$0xff]
        %s1655 = sld [smem:[#allocation3 + $0x1e]]
        %v1656 = vstv %s1655
        %v1657 = vmul.f32 %v1656, %v1653
        %v1658 = vmul.f32 %v1656, %v1654
        %v1659 = vadd.f32 %v1609, %v1657
        %v1660 = vadd.f32 %v1610, %v1658
        %s1661 = sld [smem:[#allocation3 + $0x42]]
        %v1662 = vstv %s1661
        %v1663 = vmul.f32 %v1662, %v1653
        %v1664 = vmul.f32 %v1662, %v1654
        %v1665 = vadd.f32 %v1623, %v1663
        %v1666 = vadd.f32 %v1624, %v1664
        %s1667 = sld [smem:[#allocation3 + $0x66]]
        %v1668 = vstv %s1667
        %v1669 = vmul.f32 %v1668, %v1653
        %v1670 = vmul.f32 %v1668, %v1654
        %v1671 = vadd.f32 %v1637, %v1669
        %v1672 = vadd.f32 %v1638, %v1670
        %s1673 = sld [smem:[#allocation3 + $0x8a]]
        %v1674 = vstv %s1673
        %v1675 = vmul.f32 %v1674, %v1653
        %v1676 = vmul.f32 %v1674, %v1654
        %v1677 = vadd.f32 %v1651, %v1675
        %v1678 = vadd.f32 %v1652, %v1676
        %s1679 = sld [smem:[#allocation3 + $0x1f]]
        %v1680 = vstv %s1679
        %v1681 = vmul.f32 %v1680, %v1653
        %v1682 = vmul.f32 %v1680, %v1654
        %1685 = vrot.lane.b32.xlu0 %v1681, 127
        %v1686 = vpop.permute.xlu0 %1685
        %1687 = vrot.lane.b32.xlu0 %v1682, 127
        %v1688 = vpop.permute.xlu0 %1687
        %v1691 = vadd.f32 %v1659, %v1686
        %v1692 = vadd.f32 %v1660, %v1688
        %s1693 = sld [smem:[#allocation3 + $0x43]]
        %v1694 = vstv %s1693
        %v1695 = vmul.f32 %v1694, %v1653
        %v1696 = vmul.f32 %v1694, %v1654
        %1699 = vrot.lane.b32.xlu0 %v1695, 127
        %v1700 = vpop.permute.xlu0 %1699
        %1701 = vrot.lane.b32.xlu0 %v1696, 127
        %v1702 = vpop.permute.xlu0 %1701
        %v1705 = vadd.f32 %v1665, %v1700
        %v1706 = vadd.f32 %v1666, %v1702
        %s1707 = sld [smem:[#allocation3 + $0x67]]
        %v1708 = vstv %s1707
        %v1709 = vmul.f32 %v1708, %v1653
        %v1710 = vmul.f32 %v1708, %v1654
        %1713 = vrot.lane.b32.xlu0 %v1709, 127
        %v1714 = vpop.permute.xlu0 %1713
        %1715 = vrot.lane.b32.xlu0 %v1710, 127
        %v1716 = vpop.permute.xlu0 %1715
        %v1719 = vadd.f32 %v1671, %v1714
        %v1720 = vadd.f32 %v1672, %v1716
        %s1721 = sld [smem:[#allocation3 + $0x8b]]
        %v1722 = vstv %s1721
        %v1723 = vmul.f32 %v1722, %v1653
        %v1724 = vmul.f32 %v1722, %v1654
        %1727 = vrot.lane.b32.xlu0 %v1723, 127
        %v1728 = vpop.permute.xlu0 %1727
        %1729 = vrot.lane.b32.xlu0 %v1724, 127
        %v1730 = vpop.permute.xlu0 %1729
        %v1733 = vadd.f32 %v1677, %v1728
        %v1734 = vadd.f32 %v1678, %v1730
        %s1735 = sld [smem:[#allocation3 + $0x20]]
        %v1736 = vstv %s1735
        %v1737 = vmul.f32 %v1736, %v1653
        %v1738 = vmul.f32 %v1736, %v1654
        %1741 = vrot.lane.b32.xlu0 %v1737, 126
        %v1742 = vpop.permute.xlu0 %1741
        %1743 = vrot.lane.b32.xlu0 %v1738, 126
        %v1744 = vpop.permute.xlu0 %1743
        %v1747 = vadd.f32 %v1691, %v1742
        %v1748 = vadd.f32 %v1692, %v1744
        %s1749 = sld [smem:[#allocation3 + $0x44]]
        %v1750 = vstv %s1749
        %v1751 = vmul.f32 %v1750, %v1653
        %v1752 = vmul.f32 %v1750, %v1654
        %1755 = vrot.lane.b32.xlu0 %v1751, 126
        %v1756 = vpop.permute.xlu0 %1755
        %1757 = vrot.lane.b32.xlu0 %v1752, 126
        %v1758 = vpop.permute.xlu0 %1757
        %v1761 = vadd.f32 %v1705, %v1756
        %v1762 = vadd.f32 %v1706, %v1758
        %s1763 = sld [smem:[#allocation3 + $0x68]]
        %v1764 = vstv %s1763
        %v1765 = vmul.f32 %v1764, %v1653
        %v1766 = vmul.f32 %v1764, %v1654
        %1769 = vrot.lane.b32.xlu0 %v1765, 126
        %v1770 = vpop.permute.xlu0 %1769
        %1771 = vrot.lane.b32.xlu0 %v1766, 126
        %v1772 = vpop.permute.xlu0 %1771
        %v1775 = vadd.f32 %v1719, %v1770
        %v1776 = vadd.f32 %v1720, %v1772
        %s1777 = sld [smem:[#allocation3 + $0x8c]]
        %v1778 = vstv %s1777
        %v1779 = vmul.f32 %v1778, %v1653
        %v1780 = vmul.f32 %v1778, %v1654
        %1783 = vrot.lane.b32.xlu0 %v1779, 126
        %v1784 = vpop.permute.xlu0 %1783
        %1785 = vrot.lane.b32.xlu0 %v1780, 126
        %v1786 = vpop.permute.xlu0 %1785
        %v1789 = vadd.f32 %v1733, %v1784
        %v1790 = vadd.f32 %v1734, %v1786
        %v1791 = vld [vmem:[%s270 + $0x2] sm:$0xff]
        %v1792 = vld [vmem:[%s270 + $0xa] sm:$0xff]
        %s1793 = sld [smem:[#allocation3 + $0x21]]
        %v1794 = vstv %s1793
        %v1795 = vmul.f32 %v1794, %v1791
        %v1796 = vmul.f32 %v1794, %v1792
        %v1797 = vadd.f32 %v1747, %v1795
        %v1798 = vadd.f32 %v1748, %v1796
        %s1799 = sld [smem:[#allocation3 + $0x45]]
        %v1800 = vstv %s1799
        %v1801 = vmul.f32 %v1800, %v1791
        %v1802 = vmul.f32 %v1800, %v1792
        %v1803 = vadd.f32 %v1761, %v1801
        %v1804 = vadd.f32 %v1762, %v1802
        %s1805 = sld [smem:[#allocation3 + $0x69]]
        %v1806 = vstv %s1805
        %v1807 = vmul.f32 %v1806, %v1791
        %v1808 = vmul.f32 %v1806, %v1792
        %v1809 = vadd.f32 %v1775, %v1807
        %v1810 = vadd.f32 %v1776, %v1808
        %s1811 = sld [smem:[#allocation3 + $0x8d]]
        %v1812 = vstv %s1811
        %v1813 = vmul.f32 %v1812, %v1791
        %v1814 = vmul.f32 %v1812, %v1792
        %v1815 = vadd.f32 %v1789, %v1813
        %v1816 = vadd.f32 %v1790, %v1814
        %s1817 = sld [smem:[#allocation3 + $0x22]]
        %v1818 = vstv %s1817
        %v1819 = vmul.f32 %v1818, %v1791
        %v1820 = vmul.f32 %v1818, %v1792
        %1823 = vrot.lane.b32.xlu0 %v1819, 127
        %v1824 = vpop.permute.xlu0 %1823
        %1825 = vrot.lane.b32.xlu0 %v1820, 127
        %v1826 = vpop.permute.xlu0 %1825
        %v1829 = vadd.f32 %v1797, %v1824
        %v1830 = vadd.f32 %v1798, %v1826
        %s1831 = sld [smem:[#allocation3 + $0x46]]
        %v1832 = vstv %s1831
        %v1833 = vmul.f32 %v1832, %v1791
        %v1834 = vmul.f32 %v1832, %v1792
        %1837 = vrot.lane.b32.xlu0 %v1833, 127
        %v1838 = vpop.permute.xlu0 %1837
        %1839 = vrot.lane.b32.xlu0 %v1834, 127
        %v1840 = vpop.permute.xlu0 %1839
        %v1843 = vadd.f32 %v1803, %v1838
        %v1844 = vadd.f32 %v1804, %v1840
        %s1845 = sld [smem:[#allocation3 + $0x6a]]
        %v1846 = vstv %s1845
        %v1847 = vmul.f32 %v1846, %v1791
        %v1848 = vmul.f32 %v1846, %v1792
        %1851 = vrot.lane.b32.xlu0 %v1847, 127
        %v1852 = vpop.permute.xlu0 %1851
        %1853 = vrot.lane.b32.xlu0 %v1848, 127
        %v1854 = vpop.permute.xlu0 %1853
        %v1857 = vadd.f32 %v1809, %v1852
        %v1858 = vadd.f32 %v1810, %v1854
        %s1859 = sld [smem:[#allocation3 + $0x8e]]
        %v1860 = vstv %s1859
        %v1861 = vmul.f32 %v1860, %v1791
        %v1862 = vmul.f32 %v1860, %v1792
        %1865 = vrot.lane.b32.xlu0 %v1861, 127
        %v1866 = vpop.permute.xlu0 %1865
        %1867 = vrot.lane.b32.xlu0 %v1862, 127
        %v1868 = vpop.permute.xlu0 %1867
        %v1871 = vadd.f32 %v1815, %v1866
        %v1872 = vadd.f32 %v1816, %v1868
        %s1873 = sld [smem:[#allocation3 + $0x23]]
        %v1874 = vstv %s1873
        %v1875 = vmul.f32 %v1874, %v1791
        %v1876 = vmul.f32 %v1874, %v1792
        %1879 = vrot.lane.b32.xlu0 %v1875, 126
        %v1880 = vpop.permute.xlu0 %1879
        %1881 = vrot.lane.b32.xlu0 %v1876, 126
        %v1882 = vpop.permute.xlu0 %1881
        %v1885 = vadd.f32 %v1829, %v1880
        %v1886 = vadd.f32 %v1830, %v1882
        %s1887 = sld [smem:[#allocation3 + $0x47]]
        %v1888 = vstv %s1887
        %v1889 = vmul.f32 %v1888, %v1791
        %v1890 = vmul.f32 %v1888, %v1792
        %1893 = vrot.lane.b32.xlu0 %v1889, 126
        %v1894 = vpop.permute.xlu0 %1893
        %1895 = vrot.lane.b32.xlu0 %v1890, 126
        %v1896 = vpop.permute.xlu0 %1895
        %v1899 = vadd.f32 %v1843, %v1894
        %v1900 = vadd.f32 %v1844, %v1896
        %s1901 = sld [smem:[#allocation3 + $0x6b]]
        %v1902 = vstv %s1901
        %v1903 = vmul.f32 %v1902, %v1791
        %v1904 = vmul.f32 %v1902, %v1792
        %1907 = vrot.lane.b32.xlu0 %v1903, 126
        %v1908 = vpop.permute.xlu0 %1907
        %1909 = vrot.lane.b32.xlu0 %v1904, 126
        %v1910 = vpop.permute.xlu0 %1909
        %v1913 = vadd.f32 %v1857, %v1908
        %v1914 = vadd.f32 %v1858, %v1910
        %s1915 = sld [smem:[#allocation3 + $0x8f]]
        %v1916 = vstv %s1915
        %v1917 = vmul.f32 %v1916, %v1791
        %v1918 = vmul.f32 %v1916, %v1792
        %1921 = vrot.lane.b32.xlu0 %v1917, 126
        %v1922 = vpop.permute.xlu0 %1921
        %1923 = vrot.lane.b32.xlu0 %v1918, 126
        %v1924 = vpop.permute.xlu0 %1923
        %v1927 = vadd.f32 %v1871, %v1922
        %v1928 = vadd.f32 %v1872, %v1924
        %v1929 = vmax.f32 %v1885, 0.0
        %v1930 = vmax.f32 %v1886, 0.0
        %v1931 = vmax.f32 %v1899, 0.0
        %v1932 = vmax.f32 %v1900, 0.0
        %v1933 = vmax.f32 %v1913, 0.0
        %v1934 = vmax.f32 %v1914, 0.0
        %v1935 = vmax.f32 %v1927, 0.0
        %v1936 = vmax.f32 %v1928, 0.0
        %vm1937 = vcmask 130048
        %1938 = vst.msk [vmem:[%s190] sm:$0xff] %vm1937, %v1929
        %1939 = vst.msk [vmem:[%s190 + $0x8] sm:$0xff] %vm1937, %v1930
        %s1940 = scalar_lea.vmem %s190, 16 [#allocation8]
        %1941 = vst.msk [vmem:[%s1940] sm:$0xff] %vm1937, %v1931
        %1942 = vst.msk [vmem:[%s1940 + $0x8] sm:$0xff] %vm1937, %v1932
        %s1943 = scalar_lea.vmem %s190, 32 [#allocation8]
        %1944 = vst.msk [vmem:[%s1943] sm:$0xff] %vm1937, %v1933
        %1945 = vst.msk [vmem:[%s1943 + $0x8] sm:$0xff] %vm1937, %v1934
        %s1946 = scalar_lea.vmem %s190, 48 [#allocation8]
        %1947 = vst.msk [vmem:[%s1946] sm:$0xff] %vm1937, %v1935
        %1948 = vst.msk [vmem:[%s1946 + $0x8] sm:$0xff] %vm1937, %v1936
        %s1949 = sand.u32 %s95, 1
        %s1950 = scalar_lea.sflag [#allocation4], %s1949
        %s1951 = sand.u32 %s95, 1
        %s1952 = smul.addr %s1951, 64
        %s1953 = scalar_lea.vmem [#allocation8], %s1952
        // Predicated region
        $region41: #{conv_relu_block.1} parent=31 // pred_check
          %p1954 = pneg %p105
        $region42: #{conv_relu_block.1} parent=31 // pred_check_branch
          %1956 = sbr.rel (%p1954) target = $region44
        $region43: #{conv_relu_block.1} parent=31 // pred_region
          %s1958 = ssub.s32 1024, 1024
          %1959 = vsyncadd %s1950, %s1958
          %s1960 = smul.addr %s19, 8
          %s1961 = smul.addr %s1960, 128
          %s1962 = scalar_lea.hbm %s3, %s1961
          %s1963 = sshll.u32 %s1953, 4
          %s1964 = int_to_ptr.vmem [resolvable:$true] %s1963
          %1969 = dma.vmem_to_hbm [thread:$0]  %s1964, 1024, %s1962, %s1950, 128, 128, 8
        $region44: #{conv_relu_block.1} parent=31 // pred_fallthru
          _
      $region32: #{conv_relu_block.1} parent=5 // pred_fallthru
        _
      %p1970 = scmp.le.s32.totalorder 2, %s14
      // Predicated region
      $region45: #{conv_relu_block.1} parent=5 // pred_check
        %p1971 = pneg %p1970
      $region46: #{conv_relu_block.1} parent=5 // pred_check_branch
        %1973 = sbr.rel (%p1971) target = $region48
      $region47: #{conv_relu_block.1} parent=5 // pred_region
        %s1974 = ssub.s32 %s14, 2
        // Predicated region
        $region49: #{conv_relu_block.1} parent=47 // pred_check
          %p1975 = pneg %p111
        $region50: #{conv_relu_block.1} parent=47 // pred_check_branch
          %1977 = sbr.rel (%p1975) target = $region52
        $region51: #{conv_relu_block.1} parent=47 // pred_region
          %s1978 = sand.u32 %s96, 1
          %s1979 = scalar_lea.sflag [#allocation4], %s1978
          %s1980 = sand.u32 %s96, 1
          %s1981 = smul.addr %s1980, 64
          %s1982 = scalar_lea.vmem [#allocation8], %s1981
          %1983 = dma.done %s1979, 1024
        $region52: #{conv_relu_block.1} parent=47 // pred_fallthru
          _
      $region48: #{conv_relu_block.1} parent=5 // pred_fallthru
        _
    $region6: #{conv_relu_block.1} parent=1 // loop_footer
      %s18 = sadd.s32 1, %s14
    $region7: #{conv_relu_block.1} parent=1 // loop_footer_branch
      %13 = sbr.rel target = $region3
    $region8: #{conv_relu_block.1} parent=1 // loop_exit
      _
    %1984 = vsyncpa [#allocation4], 1
    %s1985 = scalar_lea.sflag [#allocation4], 1
    %1986 = vsyncpa %s1985, 1
    %1987 = vsyncpa [#allocation5], 1
    %s1988 = scalar_lea.sflag [#allocation5], 1
    %1989 = vsyncpa %s1988, 1
    %1990 = vsyncpa [#allocation7], 1

</llo_original>
